<compile_context>
chip_gen: v7x
topology: tpu7x:2x2x1
jax: 0.10.0
libtpu: 0.0.40
codegen_flags: <defaults>
</compile_context>

<pallas_src>
import math
import functools

import jax
import jax.numpy as jnp
from jax.experimental import pallas as pl
from jax.experimental.pallas import tpu as pltpu


# ----------------------------------------------------------------------------
# helpers
# ----------------------------------------------------------------------------
def _layer_norm(x, gamma, beta, eps=1e-5):
    mu = jnp.mean(x, axis=-1, keepdims=True)
    xc = x - mu
    var = jnp.mean(xc * xc, axis=-1, keepdims=True)
    inv = jax.lax.rsqrt(var + eps)
    return xc * inv * gamma + beta


# ----------------------------------------------------------------------------
# Pallas kernel: fused transformer encoder stack
#   grid = (batch, layer); one batch row per step, all layers streamed.
# ----------------------------------------------------------------------------
def encoder_stack_kernel(x_ref, mask_ref,
                         wq_ref, wk_ref, wv_ref, bq_ref, bk_ref, bv_ref,
                         wo_ref, bo_ref, ln1g_ref, ln1b_ref,
                         w1_ref, b1_ref, w2_ref, b2_ref,
                         ln2g_ref, ln2b_ref,
                         o_ref, *, num_heads):
    layer = pl.program_id(1)
    _, S, D = x_ref.shape
    H = num_heads
    Dh = D // H
    scale = 1.0 / math.sqrt(Dh)

    # Layer 0: initialize the VMEM-resident activation carry from the input.
    @pl.when(layer == 0)
    def _():
        o_ref[...] = x_ref[...]

    x = o_ref[0]                                   # (S, D) residual stream, f32
    xb = x.astype(jnp.bfloat16)

    # additive key-padding mask, built/broadcast once (f32, -1e9 for padded)
    add_mask = mask_ref[...].reshape(1, 1, S)      # (1, 1, Sk)

    # ---- multi-head self-attention (heads batched, bf16 MXU / f32 acc) ------
    q = jnp.dot(xb, wq_ref[0], preferred_element_type=jnp.float32) + bq_ref[0]
    k = jnp.dot(xb, wk_ref[0], preferred_element_type=jnp.float32) + bk_ref[0]
    v = jnp.dot(xb, wv_ref[0], preferred_element_type=jnp.float32) + bv_ref[0]

    qh = pltpu.einshape("shd->hsd", (q * scale).reshape(S, H, Dh)).astype(jnp.bfloat16)
    kh = pltpu.einshape("shd->hsd", k.reshape(S, H, Dh)).astype(jnp.bfloat16)
    vh = pltpu.einshape("shd->hsd", v.reshape(S, H, Dh)).astype(jnp.bfloat16)

    s = jnp.einsum("hqd,hkd->hqk", qh, kh,
                   preferred_element_type=jnp.float32)          # (H, Sq, Sk)
    s = s + add_mask
    s_max = jnp.max(s, axis=-1, keepdims=True)
    p = jnp.exp(s - s_max)
    p = p * pl.reciprocal(jnp.sum(p, axis=-1, keepdims=True), approx=True)

    ah = jnp.einsum("hqk,hkd->hqd", p.astype(jnp.bfloat16), vh,
                    preferred_element_type=jnp.float32)         # (H, S, Dh)
    attn = pltpu.einshape("hsd->shd", ah).reshape(S, D)
    attn = jnp.dot(attn.astype(jnp.bfloat16), wo_ref[0],
                   preferred_element_type=jnp.float32) + bo_ref[0]

    # ---- residual + LayerNorm 1 (f32) ---------------------------------------
    y = _layer_norm(x + attn, ln1g_ref[0], ln1b_ref[0])

    # ---- feed forward: Linear -> ReLU -> Linear (bf16 matmuls) --------------
    ff = jnp.dot(y.astype(jnp.bfloat16), w1_ref[0],
                 preferred_element_type=jnp.float32) + b1_ref[0]
    ff = jnp.maximum(ff, 0.0)
    ff = jnp.dot(ff.astype(jnp.bfloat16), w2_ref[0],
                 preferred_element_type=jnp.float32) + b2_ref[0]

    # ---- residual + LayerNorm 2 (f32) ---------------------------------------
    z = _layer_norm(y + ff, ln2g_ref[0], ln2b_ref[0])
    o_ref[...] = z.reshape(1, S, D).astype(o_ref.dtype)


# ----------------------------------------------------------------------------
# Pallas kernel: output projection, tiled over the item vocabulary
# ----------------------------------------------------------------------------
def output_proj_kernel(h_ref, w_ref, b_ref, o_ref):
    o_ref[...] = (jnp.dot(h_ref[...].astype(jnp.bfloat16), w_ref[...],
                          preferred_element_type=jnp.float32)
                  + b_ref[...]).astype(o_ref.dtype)


# ----------------------------------------------------------------------------
# wrappers
# ----------------------------------------------------------------------------
_VMEM_LIMIT = 48 * 1024 * 1024   # fits v7x's 64 MiB physical VMEM with headroom


def encoder_stack(x, add_mask, sp, num_heads):
    B, S, D = x.shape
    L = sp["wq"].shape[0]
    Dff = sp["w1"].shape[-1]

    act_map = lambda b, l: (b, 0, 0)        # resident across the layer axis
    lyr_map = lambda b, l: (l, 0, 0)        # streamed (double-buffered) weights
    wspec = lambda shape: pl.BlockSpec((1,) + shape, lyr_map)

    in_specs = [
        pl.BlockSpec((1, S, D), act_map),   # x (embeddings)
        pl.BlockSpec((1, 1, S), act_map),   # additive key-padding mask
        wspec((D, D)), wspec((D, D)), wspec((D, D)),        # wq wk wv
        wspec((1, D)), wspec((1, D)), wspec((1, D)),        # bq bk bv
        wspec((D, D)), wspec((1, D)),                       # wo bo
        wspec((1, D)), wspec((1, D)),                       # ln1 gamma/beta
        wspec((D, Dff)), wspec((1, Dff)),                   # w1 b1
        wspec((Dff, D)), wspec((1, D)),                     # w2 b2
        wspec((1, D)), wspec((1, D)),                       # ln2 gamma/beta
    ]

    kern = functools.partial(encoder_stack_kernel, num_heads=num_heads)
    return pl.pallas_call(
        kern,
        out_shape=jax.ShapeDtypeStruct((B, S, D), jnp.float32),
        grid=(B, L),
        in_specs=in_specs,
        out_specs=pl.BlockSpec((1, S, D), act_map),
        compiler_params=pltpu.CompilerParams(
            dimension_semantics=("parallel", "arbitrary"),
            vmem_limit_bytes=_VMEM_LIMIT),
    )(x, add_mask,
      sp["wq"], sp["wk"], sp["wv"], sp["bq"], sp["bk"], sp["bv"],
      sp["wo"], sp["bo"], sp["ln1_g"], sp["ln1_b"],
      sp["w1"], sp["b1"], sp["w2"], sp["b2"],
      sp["ln2_g"], sp["ln2_b"])


def output_projection(last_hidden, w_out, b_out, *, tile_n=2048):
    B, D = last_hidden.shape
    N = w_out.shape[1]
    tn = N if N <= tile_n else tile_n       # lane-dense 128-multiple at real vocab
    return pl.pallas_call(
        output_proj_kernel,
        out_shape=jax.ShapeDtypeStruct((B, N), jnp.float32),
        grid=(pl.cdiv(N, tn),),
        in_specs=[
            pl.BlockSpec((B, D), lambda j: (0, 0)),    # resident activations
            pl.BlockSpec((D, tn), lambda j: (0, j)),   # streamed weight columns
            pl.BlockSpec((1, tn), lambda j: (0, j)),
        ],
        out_specs=pl.BlockSpec((B, tn), lambda j: (0, j)),
        compiler_params=pltpu.CompilerParams(
            dimension_semantics=("parallel",),
            vmem_limit_bytes=_VMEM_LIMIT),
    )(last_hidden, w_out, b_out)


def forward(params, item_sequence, sequence_mask=None, *, num_heads):
    B, S = item_sequence.shape
    item_emb = params["item_emb"][item_sequence]          # (B, S, D) gather (glue)
    pos_emb = params["pos_emb"][:S][None, :, :]           # (1, S, D)
    x = (item_emb + pos_emb).astype(jnp.float32)

    if sequence_mask is not None:
        pad = sequence_mask.astype(bool)                  # True = padded key
        add_mask = jnp.where(pad, -1e9, 0.0).astype(jnp.float32)
        last_positions = (~pad).sum(axis=1) - 1
    else:
        add_mask = jnp.zeros((B, S), jnp.float32)
        last_positions = jnp.full((B,), S - 1, jnp.int32)
    add_mask = add_mask[:, None, :]                       # (B, 1, S)

    h = encoder_stack(x, add_mask, params["stack"], num_heads)

    last_hidden = h[jnp.arange(B), last_positions]        # (B, D) gather (glue)
    return output_projection(last_hidden, params["w_out"], params["b_out"])


# ----------------------------------------------------------------------------
# deterministic parameter init (synthetic; mirrors module __init__ shapes).
# Matmul weights stored bf16; biases / LayerNorm params f32.
# ----------------------------------------------------------------------------
def init_params(key, num_items, D, num_layers, max_seq):
    ks = jax.random.split(key, 16)
    Dff = 4 * D

    def nrm(k, shape, scale=0.02):
        return (scale * jax.random.normal(k, shape)).astype(jnp.float32)

    bf = lambda a: a.astype(jnp.bfloat16)
    L = num_layers
    stack = {
        "wq": bf(nrm(ks[3], (L, D, D))),
        "wk": bf(nrm(ks[4], (L, D, D))),
        "wv": bf(nrm(ks[5], (L, D, D))),
        "bq": nrm(ks[6], (L, 1, D)),
        "bk": nrm(ks[7], (L, 1, D)),
        "bv": nrm(ks[8], (L, 1, D)),
        "wo": bf(nrm(ks[9], (L, D, D))),
        "bo": nrm(ks[10], (L, 1, D)),
        "w1": bf(nrm(ks[11], (L, D, Dff))),
        "b1": nrm(ks[12], (L, 1, Dff)),
        "w2": bf(nrm(ks[13], (L, Dff, D))),
        "b2": nrm(ks[14], (L, 1, D)),
        "ln1_g": jnp.ones((L, 1, D), jnp.float32),
        "ln1_b": jnp.zeros((L, 1, D), jnp.float32),
        "ln2_g": jnp.ones((L, 1, D), jnp.float32),
        "ln2_b": jnp.zeros((L, 1, D), jnp.float32),
    }
    return {
        "item_emb": nrm(ks[0], (num_items, D)),
        "pos_emb":  nrm(ks[1], (max_seq, D)),
        "w_out":    bf(nrm(ks[2], (D, num_items))),
        "b_out":    nrm(ks[15], (1, num_items)),
        "stack":    stack,
    }


# ----------------------------------------------------------------------------
# pure-JAX f32 reference (same math, no Pallas) for a sanity check
# ----------------------------------------------------------------------------
def reference_forward(params, item_sequence, sequence_mask, num_heads):
    B, S = item_sequence.shape
    D = params["item_emb"].shape[1]
    H, Dh = num_heads, D // num_heads
    sp = params["stack"]
    L = sp["wq"].shape[0]

    x = params["item_emb"][item_sequence] + params["pos_emb"][:S][None]
    pad = sequence_mask.astype(bool)
    add_mask = jnp.where(pad, -1e9, 0.0)

    for l in range(L):
        g = lambda name: sp[name][l].astype(jnp.float32)
        x2 = x.reshape(B * S, D)
        q = (x2 @ g("wq") + g("bq")).reshape(B, S, H, Dh).transpose(0, 2, 1, 3)
        k = (x2 @ g("wk") + g("bk")).reshape(B, S, H, Dh).transpose(0, 2, 1, 3)
        v = (x2 @ g("wv") + g("bv")).reshape(B, S, H, Dh).transpose(0, 2, 1, 3)
        s = jnp.einsum("bhqd,bhkd->bhqk", q, k) / math.sqrt(Dh)
        s = s + add_mask[:, None, None, :]
        p = jax.nn.softmax(s, axis=-1)
        attn = jnp.einsum("bhqk,bhkd->bhqd", p, v).transpose(0, 2, 1, 3).reshape(B * S, D)
        attn = attn @ g("wo") + g("bo")
        y = _layer_norm(x2 + attn, g("ln1_g"), g("ln1_b"))
        ff = jnp.maximum(y @ g("w1") + g("b1"), 0.0) @ g("w2") + g("b2")
        x = _layer_norm(y + ff, g("ln2_g"), g("ln2_b")).reshape(B, S, D)

    last_positions = (~pad).sum(axis=1) - 1
    last_hidden = x[jnp.arange(B), last_positions]
    return last_hidden @ params["w_out"].astype(jnp.float32) + params["b_out"]


# ----------------------------------------------------------------------------
if __name__ == "__main__":
    NUM_ITEMS = 64
    EMB_DIM = 32
    NUM_HEADS = 4
    NUM_LAYERS = 2
    MAX_SEQ = 16
    B, S = 2, 8

    key = jax.random.PRNGKey(0)
    pkey, ikey = jax.random.split(key)
    params = init_params(pkey, NUM_ITEMS, EMB_DIM, NUM_LAYERS, MAX_SEQ)

    item_sequence = jax.random.randint(ikey, (B, S), 0, NUM_ITEMS)
    # key_padding_mask: True = padded (same convention as src_key_padding_mask)
    sequence_mask = jnp.array(
        [[0, 0, 0, 0, 0, 0, 0, 0],
         [0, 0, 0, 0, 0, 1, 1, 1]], dtype=jnp.bool_)

    logits = forward(params, item_sequence, sequence_mask, num_heads=NUM_HEADS)
    logits = jax.block_until_ready(logits)

    ref = reference_forward(params, item_sequence, sequence_mask, NUM_HEADS)
    assert logits.shape == (B, NUM_ITEMS)
    # bf16 matmul operands + approx reciprocal -> slightly looser tolerance
    assert jnp.allclose(logits, ref, atol=5e-2, rtol=5e-2), "mismatch vs reference"

    print("KERNEL_OK")
</pallas_src>

<mosaic_0001>
module attributes {stable_mosaic.version = 11 : i64} {
  func.func @encoder_stack_kernel(%arg0: i32, %arg1: i32, %arg2: memref<1x8x32xf32, #tpu.memory_space<vmem>>, %arg3: memref<1x1x8xf32, #tpu.memory_space<vmem>>, %arg4: memref<1x32x32xbf16, #tpu.memory_space<vmem>>, %arg5: memref<1x32x32xbf16, #tpu.memory_space<vmem>>, %arg6: memref<1x32x32xbf16, #tpu.memory_space<vmem>>, %arg7: memref<1x1x32xf32, #tpu.memory_space<vmem>>, %arg8: memref<1x1x32xf32, #tpu.memory_space<vmem>>, %arg9: memref<1x1x32xf32, #tpu.memory_space<vmem>>, %arg10: memref<1x32x32xbf16, #tpu.memory_space<vmem>>, %arg11: memref<1x1x32xf32, #tpu.memory_space<vmem>>, %arg12: memref<1x1x32xf32, #tpu.memory_space<vmem>>, %arg13: memref<1x1x32xf32, #tpu.memory_space<vmem>>, %arg14: memref<1x32x128xbf16, #tpu.memory_space<vmem>>, %arg15: memref<1x1x128xf32, #tpu.memory_space<vmem>>, %arg16: memref<1x128x32xbf16, #tpu.memory_space<vmem>>, %arg17: memref<1x1x32xf32, #tpu.memory_space<vmem>>, %arg18: memref<1x1x32xf32, #tpu.memory_space<vmem>>, %arg19: memref<1x1x32xf32, #tpu.memory_space<vmem>>, %arg20: memref<1x8x32xf32, #tpu.memory_space<vmem>>) attributes {dimension_semantics = [#tpu.dimension_semantics<parallel>, #tpu.dimension_semantics<arbitrary>], iteration_bounds = array<i64: 2, 2>, scalar_prefetch = 0 : i64, scratch_operands = 0 : i64, tpu.core_type = #tpu.core_type<tc>, window_params = [{transform_indices = @transform_0, window_bounds = array<i64: 1, 8, 32>}, {transform_indices = @transform_1, window_bounds = array<i64: 1, 1, 8>}, {transform_indices = @transform_2, window_bounds = array<i64: 1, 32, 32>}, {transform_indices = @transform_3, window_bounds = array<i64: 1, 32, 32>}, {transform_indices = @transform_4, window_bounds = array<i64: 1, 32, 32>}, {transform_indices = @transform_5, window_bounds = array<i64: 1, 1, 32>}, {transform_indices = @transform_6, window_bounds = array<i64: 1, 1, 32>}, {transform_indices = @transform_7, window_bounds = array<i64: 1, 1, 32>}, {transform_indices = @transform_8, window_bounds = array<i64: 1, 32, 32>}, {transform_indices = @transform_9, window_bounds = array<i64: 1, 1, 32>}, {transform_indices = @transform_10, window_bounds = array<i64: 1, 1, 32>}, {transform_indices = @transform_11, window_bounds = array<i64: 1, 1, 32>}, {transform_indices = @transform_12, window_bounds = array<i64: 1, 32, 128>}, {transform_indices = @transform_13, window_bounds = array<i64: 1, 1, 128>}, {transform_indices = @transform_14, window_bounds = array<i64: 1, 128, 32>}, {transform_indices = @transform_15, window_bounds = array<i64: 1, 1, 32>}, {transform_indices = @transform_16, window_bounds = array<i64: 1, 1, 32>}, {transform_indices = @transform_17, window_bounds = array<i64: 1, 1, 32>}, {transform_indices = @transform_18, window_bounds = array<i64: 1, 8, 32>}]} {
    %c0_i32 = arith.constant 0 : i32
    %0 = arith.cmpi eq, %arg1, %c0_i32 : i32
    %1 = arith.extui %0 : i1 to i32
    %c0_i32_0 = arith.constant 0 : i32
    %2 = arith.cmpi ne, %1, %c0_i32_0 : i32
    scf.if %2 {
      %c0_78 = arith.constant 0 : index
      %c0_79 = arith.constant 0 : index
      %c0_80 = arith.constant 0 : index
      %134 = vector.load %arg2[%c0_78, %c0_79, %c0_80] : memref<1x8x32xf32, #tpu.memory_space<vmem>>, vector<1x8x32xf32>
      %c0_81 = arith.constant 0 : index
      %c0_82 = arith.constant 0 : index
      %c0_83 = arith.constant 0 : index
      %135 = vector.load %arg20[%c0_81, %c0_82, %c0_83] : memref<1x8x32xf32, #tpu.memory_space<vmem>>, vector<1x8x32xf32>
      tpu.vector_store %arg20[%c0_81, %c0_82, %c0_83], %134 {strides = array<i32>} : memref<1x8x32xf32, #tpu.memory_space<vmem>>, vector<1x8x32xf32>,
    } else {
    }
    %c0 = arith.constant 0 : index
    %c0_1 = arith.constant 0 : index
    %c0_2 = arith.constant 0 : index
    %3 = vector.load %arg20[%c0, %c0_1, %c0_2] : memref<1x8x32xf32, #tpu.memory_space<vmem>>, vector<1x8x32xf32>
    %4 = vector.shape_cast %3 : vector<1x8x32xf32> to vector<8x32xf32>
    %5 = arith.truncf %4 : vector<8x32xf32> to vector<8x32xbf16>
    %c0_3 = arith.constant 0 : index
    %c0_4 = arith.constant 0 : index
    %c0_5 = arith.constant 0 : index
    %6 = vector.load %arg3[%c0_3, %c0_4, %c0_5] : memref<1x1x8xf32, #tpu.memory_space<vmem>>, vector<1x1x8xf32>
    %c0_6 = arith.constant 0 : index
    %c0_7 = arith.constant 0 : index
    %c0_8 = arith.constant 0 : index
    %7 = vector.load %arg4[%c0_6, %c0_7, %c0_8] : memref<1x32x32xbf16, #tpu.memory_space<vmem>>, vector<1x32x32xbf16>
    %8 = vector.shape_cast %7 : vector<1x32x32xbf16> to vector<32x32xbf16>
    %cst = arith.constant dense<0.000000e+00> : vector<8x32xf32>
    %9 = tpu.matmul %5, %8, %cst {dimension_numbers = #tpu.dot_dimension_numbers<[1], [0], [0], [1], [0, 0, 1, 1], [], []>} : vector<8x32xbf16>, vector<32x32xbf16>, vector<8x32xf32> -> vector<8x32xf32>
    %c0_9 = arith.constant 0 : index
    %c0_10 = arith.constant 0 : index
    %c0_11 = arith.constant 0 : index
    %10 = vector.load %arg7[%c0_9, %c0_10, %c0_11] : memref<1x1x32xf32, #tpu.memory_space<vmem>>, vector<1x1x32xf32>
    %11 = vector.shape_cast %10 : vector<1x1x32xf32> to vector<1x32xf32>
    %12 = vector.broadcast %11 : vector<1x32xf32> to vector<8x32xf32>
    %13 = arith.addf %9, %12 : vector<8x32xf32>
    %c0_12 = arith.constant 0 : index
    %c0_13 = arith.constant 0 : index
    %c0_14 = arith.constant 0 : index
    %14 = vector.load %arg5[%c0_12, %c0_13, %c0_14] : memref<1x32x32xbf16, #tpu.memory_space<vmem>>, vector<1x32x32xbf16>
    %15 = vector.shape_cast %14 : vector<1x32x32xbf16> to vector<32x32xbf16>
    %cst_15 = arith.constant dense<0.000000e+00> : vector<8x32xf32>
    %16 = tpu.matmul %5, %15, %cst_15 {dimension_numbers = #tpu.dot_dimension_numbers<[1], [0], [0], [1], [0, 0, 1, 1], [], []>} : vector<8x32xbf16>, vector<32x32xbf16>, vector<8x32xf32> -> vector<8x32xf32>
    %c0_16 = arith.constant 0 : index
    %c0_17 = arith.constant 0 : index
    %c0_18 = arith.constant 0 : index
    %17 = vector.load %arg8[%c0_16, %c0_17, %c0_18] : memref<1x1x32xf32, #tpu.memory_space<vmem>>, vector<1x1x32xf32>
    %18 = vector.shape_cast %17 : vector<1x1x32xf32> to vector<1x32xf32>
    %19 = vector.broadcast %18 : vector<1x32xf32> to vector<8x32xf32>
    %20 = arith.addf %16, %19 : vector<8x32xf32>
    %c0_19 = arith.constant 0 : index
    %c0_20 = arith.constant 0 : index
    %c0_21 = arith.constant 0 : index
    %21 = vector.load %arg6[%c0_19, %c0_20, %c0_21] : memref<1x32x32xbf16, #tpu.memory_space<vmem>>, vector<1x32x32xbf16>
    %22 = vector.shape_cast %21 : vector<1x32x32xbf16> to vector<32x32xbf16>
    %cst_22 = arith.constant dense<0.000000e+00> : vector<8x32xf32>
    %23 = tpu.matmul %5, %22, %cst_22 {dimension_numbers = #tpu.dot_dimension_numbers<[1], [0], [0], [1], [0, 0, 1, 1], [], []>} : vector<8x32xbf16>, vector<32x32xbf16>, vector<8x32xf32> -> vector<8x32xf32>
    %c0_23 = arith.constant 0 : index
    %c0_24 = arith.constant 0 : index
    %c0_25 = arith.constant 0 : index
    %24 = vector.load %arg9[%c0_23, %c0_24, %c0_25] : memref<1x1x32xf32, #tpu.memory_space<vmem>>, vector<1x1x32xf32>
    %25 = vector.shape_cast %24 : vector<1x1x32xf32> to vector<1x32xf32>
    %26 = vector.broadcast %25 : vector<1x32xf32> to vector<8x32xf32>
    %27 = arith.addf %23, %26 : vector<8x32xf32>
    %cst_26 = arith.constant 0.353553385 : f32
    %28 = vector.broadcast %cst_26 : f32 to vector<8x32xf32>
    %29 = arith.mulf %13, %28 : vector<8x32xf32>
    %30 = vector.shape_cast %29 : vector<8x32xf32> to vector<8x4x8xf32>
    %31 = tpu.transpose %30, [1, 0, 2] : vector<8x4x8xf32> -> vector<4x8x8xf32>
    %32 = arith.truncf %31 : vector<4x8x8xf32> to vector<4x8x8xbf16>
    %33 = vector.shape_cast %20 : vector<8x32xf32> to vector<8x4x8xf32>
    %34 = tpu.transpose %33, [1, 0, 2] : vector<8x4x8xf32> -> vector<4x8x8xf32>
    %35 = arith.truncf %34 : vector<4x8x8xf32> to vector<4x8x8xbf16>
    %36 = vector.shape_cast %27 : vector<8x32xf32> to vector<8x4x8xf32>
    %37 = tpu.transpose %36, [1, 0, 2] : vector<8x4x8xf32> -> vector<4x8x8xf32>
    %38 = arith.truncf %37 : vector<4x8x8xf32> to vector<4x8x8xbf16>
    "tpu.trace_start"() <{level = 10 : i32, message = "hqd,hkd->hqk"}> : () -> ()
    %cst_27 = arith.constant dense<0.000000e+00> : vector<4x8x8xf32>
    %39 = tpu.matmul %32, %35, %cst_27 {dimension_numbers = #tpu.dot_dimension_numbers<[2], [2], [1], [1], [0, 0, 0, 1, 1, 1], [0], [0]>} : vector<4x8x8xbf16>, vector<4x8x8xbf16>, vector<4x8x8xf32> -> vector<4x8x8xf32>
    "tpu.trace_stop"() : () -> ()
    %40 = vector.broadcast %6 : vector<1x1x8xf32> to vector<4x8x8xf32>
    %41 = arith.addf %39, %40 : vector<4x8x8xf32>
    %cst_28 = arith.constant dense<0xFF800000> : vector<4x8xf32>
    %42 = vector.multi_reduction <maximumf>, %41, %cst_28 [2] : vector<4x8x8xf32> to vector<4x8xf32>
    %43 = vector.shape_cast %42 : vector<4x8xf32> to vector<4x8x1xf32>
    %44 = vector.broadcast %43 : vector<4x8x1xf32> to vector<4x8x8xf32>
    %45 = arith.subf %41, %44 : vector<4x8x8xf32>
    %46 = math.exp %45 : vector<4x8x8xf32>
    %cst_29 = arith.constant dense<0.000000e+00> : vector<4x8xf32>
    %47 = vector.multi_reduction <add>, %46, %cst_29 [2] : vector<4x8x8xf32> to vector<4x8xf32>
    %48 = vector.shape_cast %47 : vector<4x8xf32> to vector<4x8x1xf32>
    %49 = tpu.reciprocal %48 {approx = true} : vector<4x8x1xf32> -> vector<4x8x1xf32>
    %50 = vector.broadcast %49 : vector<4x8x1xf32> to vector<4x8x8xf32>
    %51 = arith.mulf %46, %50 : vector<4x8x8xf32>
    %52 = arith.truncf %51 : vector<4x8x8xf32> to vector<4x8x8xbf16>
    "tpu.trace_start"() <{level = 10 : i32, message = "hqk,hkd->hqd"}> : () -> ()
    %cst_30 = arith.constant dense<0.000000e+00> : vector<4x8x8xf32>
    %53 = tpu.matmul %52, %38, %cst_30 {dimension_numbers = #tpu.dot_dimension_numbers<[2], [1], [1], [2], [0, 0, 0, 1, 1, 2], [0], [0]>} : vector<4x8x8xbf16>, vector<4x8x8xbf16>, vector<4x8x8xf32> -> vector<4x8x8xf32>
    "tpu.trace_stop"() : () -> ()
    %54 = tpu.transpose %53, [1, 0, 2] : vector<4x8x8xf32> -> vector<8x4x8xf32>
    %55 = vector.shape_cast %54 : vector<8x4x8xf32> to vector<8x32xf32>
    %56 = arith.truncf %55 : vector<8x32xf32> to vector<8x32xbf16>
    %c0_31 = arith.constant 0 : index
    %c0_32 = arith.constant 0 : index
    %c0_33 = arith.constant 0 : index
    %57 = vector.load %arg10[%c0_31, %c0_32, %c0_33] : memref<1x32x32xbf16, #tpu.memory_space<vmem>>, vector<1x32x32xbf16>
    %58 = vector.shape_cast %57 : vector<1x32x32xbf16> to vector<32x32xbf16>
    %cst_34 = arith.constant dense<0.000000e+00> : vector<8x32xf32>
    %59 = tpu.matmul %56, %58, %cst_34 {dimension_numbers = #tpu.dot_dimension_numbers<[1], [0], [0], [1], [0, 0, 1, 1], [], []>} : vector<8x32xbf16>, vector<32x32xbf16>, vector<8x32xf32> -> vector<8x32xf32>
    %c0_35 = arith.constant 0 : index
    %c0_36 = arith.constant 0 : index
    %c0_37 = arith.constant 0 : index
    %60 = vector.load %arg11[%c0_35, %c0_36, %c0_37] : memref<1x1x32xf32, #tpu.memory_space<vmem>>, vector<1x1x32xf32>
    %61 = vector.shape_cast %60 : vector<1x1x32xf32> to vector<1x32xf32>
    %62 = vector.broadcast %61 : vector<1x32xf32> to vector<8x32xf32>
    %63 = arith.addf %59, %62 : vector<8x32xf32>
    %64 = arith.addf %4, %63 : vector<8x32xf32>
    %c0_38 = arith.constant 0 : index
    %c0_39 = arith.constant 0 : index
    %c0_40 = arith.constant 0 : index
    %65 = vector.load %arg12[%c0_38, %c0_39, %c0_40] : memref<1x1x32xf32, #tpu.memory_space<vmem>>, vector<1x1x32xf32>
    %66 = vector.shape_cast %65 : vector<1x1x32xf32> to vector<1x32xf32>
    %c0_41 = arith.constant 0 : index
    %c0_42 = arith.constant 0 : index
    %c0_43 = arith.constant 0 : index
    %67 = vector.load %arg13[%c0_41, %c0_42, %c0_43] : memref<1x1x32xf32, #tpu.memory_space<vmem>>, vector<1x1x32xf32>
    %68 = vector.shape_cast %67 : vector<1x1x32xf32> to vector<1x32xf32>
    %cst_44 = arith.constant dense<0.000000e+00> : vector<8xf32>
    %69 = vector.multi_reduction <add>, %64, %cst_44 [1] : vector<8x32xf32> to vector<8xf32>
    %70 = vector.shape_cast %69 : vector<8xf32> to vector<8x1xf32>
    %cst_45 = arith.constant 3.200000e+01 : f32
    %71 = vector.broadcast %cst_45 : f32 to vector<8x1xf32>
    %72 = arith.divf %70, %71 : vector<8x1xf32>
    %73 = vector.broadcast %72 : vector<8x1xf32> to vector<8x32xf32>
    %74 = arith.subf %64, %73 : vector<8x32xf32>
    %75 = arith.mulf %74, %74 : vector<8x32xf32>
    %cst_46 = arith.constant dense<0.000000e+00> : vector<8xf32>
    %76 = vector.multi_reduction <add>, %75, %cst_46 [1] : vector<8x32xf32> to vector<8xf32>
    %77 = vector.shape_cast %76 : vector<8xf32> to vector<8x1xf32>
    %cst_47 = arith.constant 3.200000e+01 : f32
    %78 = vector.broadcast %cst_47 : f32 to vector<8x1xf32>
    %79 = arith.divf %77, %78 : vector<8x1xf32>
    %cst_48 = arith.constant 9.99999974E-6 : f32
    %80 = vector.broadcast %cst_48 : f32 to vector<8x1xf32>
    %81 = arith.addf %79, %80 : vector<8x1xf32>
    %82 = math.rsqrt %81 : vector<8x1xf32>
    %83 = vector.broadcast %82 : vector<8x1xf32> to vector<8x32xf32>
    %84 = arith.mulf %74, %83 : vector<8x32xf32>
    %85 = vector.broadcast %66 : vector<1x32xf32> to vector<8x32xf32>
    %86 = arith.mulf %84, %85 : vector<8x32xf32>
    %87 = vector.broadcast %68 : vector<1x32xf32> to vector<8x32xf32>
    %88 = arith.addf %86, %87 : vector<8x32xf32>
    %89 = arith.truncf %88 : vector<8x32xf32> to vector<8x32xbf16>
    %c0_49 = arith.constant 0 : index
    %c0_50 = arith.constant 0 : index
    %c0_51 = arith.constant 0 : index
    %90 = vector.load %arg14[%c0_49, %c0_50, %c0_51] : memref<1x32x128xbf16, #tpu.memory_space<vmem>>, vector<1x32x128xbf16>
    %91 = vector.shape_cast %90 : vector<1x32x128xbf16> to vector<32x128xbf16>
    %cst_52 = arith.constant dense<0.000000e+00> : vector<8x128xf32>
    %92 = tpu.matmul %89, %91, %cst_52 {dimension_numbers = #tpu.dot_dimension_numbers<[1], [0], [0], [1], [0, 0, 1, 1], [], []>} : vector<8x32xbf16>, vector<32x128xbf16>, vector<8x128xf32> -> vector<8x128xf32>
    %c0_53 = arith.constant 0 : index
    %c0_54 = arith.constant 0 : index
    %c0_55 = arith.constant 0 : index
    %93 = vector.load %arg15[%c0_53, %c0_54, %c0_55] : memref<1x1x128xf32, #tpu.memory_space<vmem>>, vector<1x1x128xf32>
    %94 = vector.shape_cast %93 : vector<1x1x128xf32> to vector<1x128xf32>
    %95 = vector.broadcast %94 : vector<1x128xf32> to vector<8x128xf32>
    %96 = arith.addf %92, %95 : vector<8x128xf32>
    %cst_56 = arith.constant 0.000000e+00 : f32
    %97 = vector.broadcast %cst_56 : f32 to vector<8x128xf32>
    %98 = arith.maximumf %96, %97 : vector<8x128xf32>
    %99 = arith.truncf %98 : vector<8x128xf32> to vector<8x128xbf16>
    %c0_57 = arith.constant 0 : index
    %c0_58 = arith.constant 0 : index
    %c0_59 = arith.constant 0 : index
    %100 = vector.load %arg16[%c0_57, %c0_58, %c0_59] : memref<1x128x32xbf16, #tpu.memory_space<vmem>>, vector<1x128x32xbf16>
    %101 = vector.shape_cast %100 : vector<1x128x32xbf16> to vector<128x32xbf16>
    %cst_60 = arith.constant dense<0.000000e+00> : vector<8x32xf32>
    %102 = tpu.matmul %99, %101, %cst_60 {dimension_numbers = #tpu.dot_dimension_numbers<[1], [0], [0], [1], [0, 0, 1, 1], [], []>} : vector<8x128xbf16>, vector<128x32xbf16>, vector<8x32xf32> -> vector<8x32xf32>
    %c0_61 = arith.constant 0 : index
    %c0_62 = arith.constant 0 : index
    %c0_63 = arith.constant 0 : index
    %103 = vector.load %arg17[%c0_61, %c0_62, %c0_63] : memref<1x1x32xf32, #tpu.memory_space<vmem>>, vector<1x1x32xf32>
    %104 = vector.shape_cast %103 : vector<1x1x32xf32> to vector<1x32xf32>
    %105 = vector.broadcast %104 : vector<1x32xf32> to vector<8x32xf32>
    %106 = arith.addf %102, %105 : vector<8x32xf32>
    %107 = arith.addf %88, %106 : vector<8x32xf32>
    %c0_64 = arith.constant 0 : index
    %c0_65 = arith.constant 0 : index
    %c0_66 = arith.constant 0 : index
    %108 = vector.load %arg18[%c0_64, %c0_65, %c0_66] : memref<1x1x32xf32, #tpu.memory_space<vmem>>, vector<1x1x32xf32>
    %109 = vector.shape_cast %108 : vector<1x1x32xf32> to vector<1x32xf32>
    %c0_67 = arith.constant 0 : index
    %c0_68 = arith.constant 0 : index
    %c0_69 = arith.constant 0 : index
    %110 = vector.load %arg19[%c0_67, %c0_68, %c0_69] : memref<1x1x32xf32, #tpu.memory_space<vmem>>, vector<1x1x32xf32>
    %111 = vector.shape_cast %110 : vector<1x1x32xf32> to vector<1x32xf32>
    %cst_70 = arith.constant dense<0.000000e+00> : vector<8xf32>
    %112 = vector.multi_reduction <add>, %107, %cst_70 [1] : vector<8x32xf32> to vector<8xf32>
    %113 = vector.shape_cast %112 : vector<8xf32> to vector<8x1xf32>
    %cst_71 = arith.constant 3.200000e+01 : f32
    %114 = vector.broadcast %cst_71 : f32 to vector<8x1xf32>
    %115 = arith.divf %113, %114 : vector<8x1xf32>
    %116 = vector.broadcast %115 : vector<8x1xf32> to vector<8x32xf32>
    %117 = arith.subf %107, %116 : vector<8x32xf32>
    %118 = arith.mulf %117, %117 : vector<8x32xf32>
    %cst_72 = arith.constant dense<0.000000e+00> : vector<8xf32>
    %119 = vector.multi_reduction <add>, %118, %cst_72 [1] : vector<8x32xf32> to vector<8xf32>
    %120 = vector.shape_cast %119 : vector<8xf32> to vector<8x1xf32>
    %cst_73 = arith.constant 3.200000e+01 : f32
    %121 = vector.broadcast %cst_73 : f32 to vector<8x1xf32>
    %122 = arith.divf %120, %121 : vector<8x1xf32>
    %cst_74 = arith.constant 9.99999974E-6 : f32
    %123 = vector.broadcast %cst_74 : f32 to vector<8x1xf32>
    %124 = arith.addf %122, %123 : vector<8x1xf32>
    %125 = math.rsqrt %124 : vector<8x1xf32>
    %126 = vector.broadcast %125 : vector<8x1xf32> to vector<8x32xf32>
    %127 = arith.mulf %117, %126 : vector<8x32xf32>
    %128 = vector.broadcast %109 : vector<1x32xf32> to vector<8x32xf32>
    %129 = arith.mulf %127, %128 : vector<8x32xf32>
    %130 = vector.broadcast %111 : vector<1x32xf32> to vector<8x32xf32>
    %131 = arith.addf %129, %130 : vector<8x32xf32>
    %132 = vector.shape_cast %131 : vector<8x32xf32> to vector<1x8x32xf32>
    %c0_75 = arith.constant 0 : index
    %c0_76 = arith.constant 0 : index
    %c0_77 = arith.constant 0 : index
    %133 = vector.load %arg20[%c0_75, %c0_76, %c0_77] : memref<1x8x32xf32, #tpu.memory_space<vmem>>, vector<1x8x32xf32>
    tpu.vector_store %arg20[%c0_75, %c0_76, %c0_77], %132 {strides = array<i32>} : memref<1x8x32xf32, #tpu.memory_space<vmem>>, vector<1x8x32xf32>,
    return
  }
  func.func @transform_0(%arg0: i32, %arg1: i32) -> (i32, i32, i32) {
    %c0_i32 = arith.constant 0 : i32
    %c0_i32_0 = arith.constant 0 : i32
    %c0_i32_1 = arith.constant 0 : i32
    return %arg0, %c0_i32, %c0_i32_0 : i32, i32, i32
  }
  func.func @transform_1(%arg0: i32, %arg1: i32) -> (i32, i32, i32) {
    %c0_i32 = arith.constant 0 : i32
    %c0_i32_0 = arith.constant 0 : i32
    %c0_i32_1 = arith.constant 0 : i32
    return %arg0, %c0_i32, %c0_i32_0 : i32, i32, i32
  }
  func.func @transform_2(%arg0: i32, %arg1: i32) -> (i32, i32, i32) {
    %c0_i32 = arith.constant 0 : i32
    %c0_i32_0 = arith.constant 0 : i32
    %c0_i32_1 = arith.constant 0 : i32
    return %arg1, %c0_i32, %c0_i32_0 : i32, i32, i32
  }
  func.func @transform_3(%arg0: i32, %arg1: i32) -> (i32, i32, i32) {
    %c0_i32 = arith.constant 0 : i32
    %c0_i32_0 = arith.constant 0 : i32
    %c0_i32_1 = arith.constant 0 : i32
    return %arg1, %c0_i32, %c0_i32_0 : i32, i32, i32
  }
  func.func @transform_4(%arg0: i32, %arg1: i32) -> (i32, i32, i32) {
    %c0_i32 = arith.constant 0 : i32
    %c0_i32_0 = arith.constant 0 : i32
    %c0_i32_1 = arith.constant 0 : i32
    return %arg1, %c0_i32, %c0_i32_0 : i32, i32, i32
  }
  func.func @transform_5(%arg0: i32, %arg1: i32) -> (i32, i32, i32) {
    %c0_i32 = arith.constant 0 : i32
    %c0_i32_0 = arith.constant 0 : i32
    %c0_i32_1 = arith.constant 0 : i32
    return %arg1, %c0_i32, %c0_i32_0 : i32, i32, i32
  }
  func.func @transform_6(%arg0: i32, %arg1: i32) -> (i32, i32, i32) {
    %c0_i32 = arith.constant 0 : i32
    %c0_i32_0 = arith.constant 0 : i32
    %c0_i32_1 = arith.constant 0 : i32
    return %arg1, %c0_i32, %c0_i32_0 : i32, i32, i32
  }
  func.func @transform_7(%arg0: i32, %arg1: i32) -> (i32, i32, i32) {
    %c0_i32 = arith.constant 0 : i32
    %c0_i32_0 = arith.constant 0 : i32
    %c0_i32_1 = arith.constant 0 : i32
    return %arg1, %c0_i32, %c0_i32_0 : i32, i32, i32
  }
  func.func @transform_8(%arg0: i32, %arg1: i32) -> (i32, i32, i32) {
    %c0_i32 = arith.constant 0 : i32
    %c0_i32_0 = arith.constant 0 : i32
    %c0_i32_1 = arith.constant 0 : i32
    return %arg1, %c0_i32, %c0_i32_0 : i32, i32, i32
  }
  func.func @transform_9(%arg0: i32, %arg1: i32) -> (i32, i32, i32) {
    %c0_i32 = arith.constant 0 : i32
    %c0_i32_0 = arith.constant 0 : i32
    %c0_i32_1 = arith.constant 0 : i32
    return %arg1, %c0_i32, %c0_i32_0 : i32, i32, i32
  }
  func.func @transform_10(%arg0: i32, %arg1: i32) -> (i32, i32, i32) {
    %c0_i32 = arith.constant 0 : i32
    %c0_i32_0 = arith.constant 0 : i32
    %c0_i32_1 = arith.constant 0 : i32
    return %arg1, %c0_i32, %c0_i32_0 : i32, i32, i32
  }
  func.func @transform_11(%arg0: i32, %arg1: i32) -> (i32, i32, i32) {
    %c0_i32 = arith.constant 0 : i32
    %c0_i32_0 = arith.constant 0 : i32
    %c0_i32_1 = arith.constant 0 : i32
    return %arg1, %c0_i32, %c0_i32_0 : i32, i32, i32
  }
  func.func @transform_12(%arg0: i32, %arg1: i32) -> (i32, i32, i32) {
    %c0_i32 = arith.constant 0 : i32
    %c0_i32_0 = arith.constant 0 : i32
    %c0_i32_1 = arith.constant 0 : i32
    return %arg1, %c0_i32, %c0_i32_0 : i32, i32, i32
  }
  func.func @transform_13(%arg0: i32, %arg1: i32) -> (i32, i32, i32) {
    %c0_i32 = arith.constant 0 : i32
    %c0_i32_0 = arith.constant 0 : i32
    %c0_i32_1 = arith.constant 0 : i32
    return %arg1, %c0_i32, %c0_i32_0 : i32, i32, i32
  }
  func.func @transform_14(%arg0: i32, %arg1: i32) -> (i32, i32, i32) {
    %c0_i32 = arith.constant 0 : i32
    %c0_i32_0 = arith.constant 0 : i32
    %c0_i32_1 = arith.constant 0 : i32
    return %arg1, %c0_i32, %c0_i32_0 : i32, i32, i32
  }
  func.func @transform_15(%arg0: i32, %arg1: i32) -> (i32, i32, i32) {
    %c0_i32 = arith.constant 0 : i32
    %c0_i32_0 = arith.constant 0 : i32
    %c0_i32_1 = arith.constant 0 : i32
    return %arg1, %c0_i32, %c0_i32_0 : i32, i32, i32
  }
  func.func @transform_16(%arg0: i32, %arg1: i32) -> (i32, i32, i32) {
    %c0_i32 = arith.constant 0 : i32
    %c0_i32_0 = arith.constant 0 : i32
    %c0_i32_1 = arith.constant 0 : i32
    return %arg1, %c0_i32, %c0_i32_0 : i32, i32, i32
  }
  func.func @transform_17(%arg0: i32, %arg1: i32) -> (i32, i32, i32) {
    %c0_i32 = arith.constant 0 : i32
    %c0_i32_0 = arith.constant 0 : i32
    %c0_i32_1 = arith.constant 0 : i32
    return %arg1, %c0_i32, %c0_i32_0 : i32, i32, i32
  }
  func.func @transform_18(%arg0: i32, %arg1: i32) -> (i32, i32, i32) {
    %c0_i32 = arith.constant 0 : i32
    %c0_i32_0 = arith.constant 0 : i32
    %c0_i32_1 = arith.constant 0 : i32
    return %arg0, %c0_i32, %c0_i32_0 : i32, i32, i32
  }
}

</mosaic_0001>

<llo_original>
// kernel: tpu_custom_call.1
$region0: #{tpu_custom_call.1}
  #allocation0 [shape = 'u32[]', space=smem, size = 0x4, offset = 0x4, fixed_abs, tag = 'smem constant byte address 0x4 - core index']
  #allocation1 [shape = 'u32[144,128]{1,0:T(1,128)}', space=vmem, size = 0x12000, scoped, tag = 'internal scratch']
  %s0 = inlined_call_operand.hbm [shape: f32[2,8,32], index: 0, kind: input, shape index: {}]
  %s1 = inlined_call_operand.vmem [shape: f32[2,1,8], index: 1, kind: input, shape index: {}]
  %s2 = inlined_call_operand.vmem [shape: bf16[2,32,32], index: 2, kind: input, shape index: {}]
  %s3 = inlined_call_operand.vmem [shape: bf16[2,32,32], index: 3, kind: input, shape index: {}]
  %s4 = inlined_call_operand.vmem [shape: bf16[2,32,32], index: 4, kind: input, shape index: {}]
  %s5 = inlined_call_operand.vmem [shape: f32[2,1,32], index: 5, kind: input, shape index: {}]
  %s6 = inlined_call_operand.vmem [shape: f32[2,1,32], index: 6, kind: input, shape index: {}]
  %s7 = inlined_call_operand.vmem [shape: f32[2,1,32], index: 7, kind: input, shape index: {}]
  %s8 = inlined_call_operand.vmem [shape: bf16[2,32,32], index: 8, kind: input, shape index: {}]
  %s9 = inlined_call_operand.vmem [shape: f32[2,1,32], index: 9, kind: input, shape index: {}]
  %s10 = inlined_call_operand.vmem [shape: f32[2,1,32], index: 10, kind: input, shape index: {}]
  %s11 = inlined_call_operand.vmem [shape: f32[2,1,32], index: 11, kind: input, shape index: {}]
  %s12 = inlined_call_operand.vmem [shape: bf16[2,32,128], index: 12, kind: input, shape index: {}]
  %s13 = inlined_call_operand.vmem [shape: f32[2,1,128], index: 13, kind: input, shape index: {}]
  %s14 = inlined_call_operand.vmem [shape: bf16[2,128,32], index: 14, kind: input, shape index: {}]
  %s15 = inlined_call_operand.vmem [shape: f32[2,1,32], index: 15, kind: input, shape index: {}]
  %s16 = inlined_call_operand.vmem [shape: f32[2,1,32], index: 16, kind: input, shape index: {}]
  %s17 = inlined_call_operand.vmem [shape: f32[2,1,32], index: 17, kind: input, shape index: {}]
  %s18 = inlined_call_operand.hbm [shape: f32[2,8,32], index: 18, kind: output, shape index: {}]
  %s19 = sld [smem:[#allocation0]]
  $region113: #{tpu_custom_call.1} parent=0
    _
  %s21 = ssub.s32 1, %s19
  %s22 = scalar_select 0, %s21, %s19
  $region1: #{tpu_custom_call.1} parent=0
    #allocation2 [shape = 'u8[8192]{0}', space=vmem, size = 0x2000, scoped, tag = 'input window, operand 0']
    #allocation3 [shape = 's32[2]{0}', space=sflag, size = 0x8, scoped, tag = 'scoped memory for tpu_custom_call.1']
    #allocation4 [shape = 's32[2]{0}', space=sflag, size = 0x8, scoped, tag = 'scoped memory for tpu_custom_call.1']
    #allocation5 [shape = 'u8[8192]{0}', space=vmem, size = 0x2000, scoped, tag = 'output window, operand 0']
    %23 = vsyncpa [#allocation3], 0
    %s24 = scalar_lea.sflag [#allocation3], 1
    %25 = vsyncpa %s24, 0
    %26 = vsyncpa [#allocation4], 0
    %s27 = scalar_lea.sflag [#allocation4], 1
    %28 = vsyncpa %s27, 0
    loop: start=0, step=1, limit=6
    $region2: #{tpu_custom_call.1} parent=1 // loop_pre_header
      _
    $region3: #{tpu_custom_call.1} parent=1 // loop_header
      %s30 = sphi 0, %s34
      %p31 = scmp.ge.s32.totalorder %s30, 6
      %s37 = sphi 0, %s49
      %s38 = sphi 0, %s45
      %s39 = sphi 0, %s37
      %s40 = sphi 0, %s38
      %s41 = sphi 0, %s39
      %s42 = sphi 0, %s40
      %s52 = sphi 0, %s54
      %s55 = sphi 0, %s52
      %s56 = sphi 0, %s55
      %s72 = sphi 0, %s56
      %s78 = sphi 0, %s80
      %s81 = sphi 0, %s78
      %s82 = sphi 0, %s81
      %s98 = sphi 0, %s82
      %s104 = sphi 0, %s106
      %s107 = sphi 0, %s104
      %s108 = sphi 0, %s107
      %s124 = sphi 0, %s108
      %s130 = sphi 0, %s132
      %s133 = sphi 0, %s130
      %s134 = sphi 0, %s133
      %s150 = sphi 0, %s134
      %s156 = sphi 0, %s158
      %s159 = sphi 0, %s156
      %s160 = sphi 0, %s159
      %s176 = sphi 0, %s160
      %s182 = sphi 0, %s184
      %s185 = sphi 0, %s182
      %s186 = sphi 0, %s185
      %s202 = sphi 0, %s186
      %s208 = sphi 0, %s210
      %s211 = sphi 0, %s208
      %s212 = sphi 0, %s211
      %s228 = sphi 0, %s212
      %s234 = sphi 0, %s236
      %s237 = sphi 0, %s234
      %s238 = sphi 0, %s237
      %s254 = sphi 0, %s238
      %s260 = sphi 0, %s262
      %s263 = sphi 0, %s260
      %s264 = sphi 0, %s263
      %s280 = sphi 0, %s264
      %s286 = sphi 0, %s288
      %s289 = sphi 0, %s286
      %s290 = sphi 0, %s289
      %s306 = sphi 0, %s290
      %s312 = sphi 0, %s314
      %s315 = sphi 0, %s312
      %s316 = sphi 0, %s315
      %s332 = sphi 0, %s316
      %s338 = sphi 0, %s340
      %s341 = sphi 0, %s338
      %s342 = sphi 0, %s341
      %s358 = sphi 0, %s342
      %s364 = sphi 0, %s366
      %s367 = sphi 0, %s364
      %s368 = sphi 0, %s367
      %s384 = sphi 0, %s368
      %s390 = sphi 0, %s392
      %s393 = sphi 0, %s390
      %s394 = sphi 0, %s393
      %s410 = sphi 0, %s394
      %s416 = sphi 0, %s418
      %s419 = sphi 0, %s416
      %s420 = sphi 0, %s419
      %s436 = sphi 0, %s420
      %s442 = sphi 0, %s444
      %s445 = sphi 0, %s442
      %s446 = sphi 0, %s445
      %s462 = sphi 0, %s446
      %s468 = sphi 0, %s470
      %s471 = sphi 0, %s468
      %s472 = sphi 0, %s471
      %s488 = sphi 0, %s472
      %s494 = sphi 0, %s496
      %s497 = sphi 0, %s494
      %s498 = sphi 0, %s497
      %s514 = sphi 0, %s498
      %s520 = sphi 0, %s522
      %s523 = sphi 0, %s520
      %s524 = sphi 0, %s523
      %s540 = sphi 0, %s524
    $region4: #{tpu_custom_call.1} parent=1 // loop_header_branch
      %33 = sbr.rel (%p31) target = $region8
    $region5: #{tpu_custom_call.1} parent=1 // loop_body
      %s35 = ssub.s32 %s30, 1
      %s36 = ssub.s32 %s30, 2
      %s43 = sadd.s32 1, %s38
      %p44 = scmp.ge.s32.totalorder %s43, 2
      %s45 = scalar_select %p44, 0, %s43
      %s46 = sadd.s32 1, %s37
      %s47 = scalar_select %p44, %s46, %s37
      %p48 = scmp.ge.s32.totalorder %s47, 2
      %s49 = scalar_select %p48, 0, %s47
      %s50 = ssub.s32 %s37, %s49
      %p51 = scmp.eq.s32.totalorder %s50, 0
      %s53 = sadd.s32 %s52, 1
      %s54 = scalar_select %p51, %s52, %s53
      %p57 = pneg %p51
      %p58 = scmp.eq.s32.totalorder %s30, 3
      %p59 = por %p57, %p58
      %p60 = scmp.ne.s32.totalorder %s52, %s55
      %p61 = scmp.eq.s32.totalorder %s30, 0
      %p62 = por %p60, %p61
      %p63 = scmp.ne.s32.totalorder %s52, %s55
      %p64 = scmp.eq.s32.totalorder %s35, 3
      %p65 = por %p63, %p64
      %p66 = scmp.ne.s32.totalorder %s55, %s56
      %p67 = scmp.eq.s32.totalorder %s35, 0
      %p68 = por %p66, %p67
      %p69 = scmp.ne.s32.totalorder %s55, %s56
      %p70 = scmp.eq.s32.totalorder %s36, 3
      %p71 = por %p69, %p70
      %p73 = scmp.ne.s32.totalorder %s56, %s72
      %p74 = scmp.eq.s32.totalorder %s36, 0
      %p75 = por %p73, %p74
      %s76 = ssub.s32 %s37, %s49
      %p77 = scmp.eq.s32.totalorder %s76, 0
      %s79 = sadd.s32 %s78, 1
      %s80 = scalar_select %p77, %s78, %s79
      %p83 = pneg %p77
      %p84 = scmp.eq.s32.totalorder %s30, 3
      %p85 = por %p83, %p84
      %p86 = scmp.ne.s32.totalorder %s78, %s81
      %p87 = scmp.eq.s32.totalorder %s30, 0
      %p88 = por %p86, %p87
      %p89 = scmp.ne.s32.totalorder %s78, %s81
      %p90 = scmp.eq.s32.totalorder %s35, 3
      %p91 = por %p89, %p90
      %p92 = scmp.ne.s32.totalorder %s81, %s82
      %p93 = scmp.eq.s32.totalorder %s35, 0
      %p94 = por %p92, %p93
      %p95 = scmp.ne.s32.totalorder %s81, %s82
      %p96 = scmp.eq.s32.totalorder %s36, 3
      %p97 = por %p95, %p96
      %p99 = scmp.ne.s32.totalorder %s82, %s98
      %p100 = scmp.eq.s32.totalorder %s36, 0
      %p101 = por %p99, %p100
      %s102 = ssub.s32 %s38, %s45
      %p103 = scmp.eq.s32.totalorder %s102, 0
      %s105 = sadd.s32 %s104, 1
      %s106 = scalar_select %p103, %s104, %s105
      %p109 = pneg %p103
      %p110 = scmp.eq.s32.totalorder %s30, 3
      %p111 = por %p109, %p110
      %p112 = scmp.ne.s32.totalorder %s104, %s107
      %p113 = scmp.eq.s32.totalorder %s30, 0
      %p114 = por %p112, %p113
      %p115 = scmp.ne.s32.totalorder %s104, %s107
      %p116 = scmp.eq.s32.totalorder %s35, 3
      %p117 = por %p115, %p116
      %p118 = scmp.ne.s32.totalorder %s107, %s108
      %p119 = scmp.eq.s32.totalorder %s35, 0
      %p120 = por %p118, %p119
      %p121 = scmp.ne.s32.totalorder %s107, %s108
      %p122 = scmp.eq.s32.totalorder %s36, 3
      %p123 = por %p121, %p122
      %p125 = scmp.ne.s32.totalorder %s108, %s124
      %p126 = scmp.eq.s32.totalorder %s36, 0
      %p127 = por %p125, %p126
      %s128 = ssub.s32 %s38, %s45
      %p129 = scmp.eq.s32.totalorder %s128, 0
      %s131 = sadd.s32 %s130, 1
      %s132 = scalar_select %p129, %s130, %s131
      %p135 = pneg %p129
      %p136 = scmp.eq.s32.totalorder %s30, 3
      %p137 = por %p135, %p136
      %p138 = scmp.ne.s32.totalorder %s130, %s133
      %p139 = scmp.eq.s32.totalorder %s30, 0
      %p140 = por %p138, %p139
      %p141 = scmp.ne.s32.totalorder %s130, %s133
      %p142 = scmp.eq.s32.totalorder %s35, 3
      %p143 = por %p141, %p142
      %p144 = scmp.ne.s32.totalorder %s133, %s134
      %p145 = scmp.eq.s32.totalorder %s35, 0
      %p146 = por %p144, %p145
      %p147 = scmp.ne.s32.totalorder %s133, %s134
      %p148 = scmp.eq.s32.totalorder %s36, 3
      %p149 = por %p147, %p148
      %p151 = scmp.ne.s32.totalorder %s134, %s150
      %p152 = scmp.eq.s32.totalorder %s36, 0
      %p153 = por %p151, %p152
      %s154 = ssub.s32 %s38, %s45
      %p155 = scmp.eq.s32.totalorder %s154, 0
      %s157 = sadd.s32 %s156, 1
      %s158 = scalar_select %p155, %s156, %s157
      %p161 = pneg %p155
      %p162 = scmp.eq.s32.totalorder %s30, 3
      %p163 = por %p161, %p162
      %p164 = scmp.ne.s32.totalorder %s156, %s159
      %p165 = scmp.eq.s32.totalorder %s30, 0
      %p166 = por %p164, %p165
      %p167 = scmp.ne.s32.totalorder %s156, %s159
      %p168 = scmp.eq.s32.totalorder %s35, 3
      %p169 = por %p167, %p168
      %p170 = scmp.ne.s32.totalorder %s159, %s160
      %p171 = scmp.eq.s32.totalorder %s35, 0
      %p172 = por %p170, %p171
      %p173 = scmp.ne.s32.totalorder %s159, %s160
      %p174 = scmp.eq.s32.totalorder %s36, 3
      %p175 = por %p173, %p174
      %p177 = scmp.ne.s32.totalorder %s160, %s176
      %p178 = scmp.eq.s32.totalorder %s36, 0
      %p179 = por %p177, %p178
      %s180 = ssub.s32 %s38, %s45
      %p181 = scmp.eq.s32.totalorder %s180, 0
      %s183 = sadd.s32 %s182, 1
      %s184 = scalar_select %p181, %s182, %s183
      %p187 = pneg %p181
      %p188 = scmp.eq.s32.totalorder %s30, 3
      %p189 = por %p187, %p188
      %p190 = scmp.ne.s32.totalorder %s182, %s185
      %p191 = scmp.eq.s32.totalorder %s30, 0
      %p192 = por %p190, %p191
      %p193 = scmp.ne.s32.totalorder %s182, %s185
      %p194 = scmp.eq.s32.totalorder %s35, 3
      %p195 = por %p193, %p194
      %p196 = scmp.ne.s32.totalorder %s185, %s186
      %p197 = scmp.eq.s32.totalorder %s35, 0
      %p198 = por %p196, %p197
      %p199 = scmp.ne.s32.totalorder %s185, %s186
      %p200 = scmp.eq.s32.totalorder %s36, 3
      %p201 = por %p199, %p200
      %p203 = scmp.ne.s32.totalorder %s186, %s202
      %p204 = scmp.eq.s32.totalorder %s36, 0
      %p205 = por %p203, %p204
      %s206 = ssub.s32 %s38, %s45
      %p207 = scmp.eq.s32.totalorder %s206, 0
      %s209 = sadd.s32 %s208, 1
      %s210 = scalar_select %p207, %s208, %s209
      %p213 = pneg %p207
      %p214 = scmp.eq.s32.totalorder %s30, 3
      %p215 = por %p213, %p214
      %p216 = scmp.ne.s32.totalorder %s208, %s211
      %p217 = scmp.eq.s32.totalorder %s30, 0
      %p218 = por %p216, %p217
      %p219 = scmp.ne.s32.totalorder %s208, %s211
      %p220 = scmp.eq.s32.totalorder %s35, 3
      %p221 = por %p219, %p220
      %p222 = scmp.ne.s32.totalorder %s211, %s212
      %p223 = scmp.eq.s32.totalorder %s35, 0
      %p224 = por %p222, %p223
      %p225 = scmp.ne.s32.totalorder %s211, %s212
      %p226 = scmp.eq.s32.totalorder %s36, 3
      %p227 = por %p225, %p226
      %p229 = scmp.ne.s32.totalorder %s212, %s228
      %p230 = scmp.eq.s32.totalorder %s36, 0
      %p231 = por %p229, %p230
      %s232 = ssub.s32 %s38, %s45
      %p233 = scmp.eq.s32.totalorder %s232, 0
      %s235 = sadd.s32 %s234, 1
      %s236 = scalar_select %p233, %s234, %s235
      %p239 = pneg %p233
      %p240 = scmp.eq.s32.totalorder %s30, 3
      %p241 = por %p239, %p240
      %p242 = scmp.ne.s32.totalorder %s234, %s237
      %p243 = scmp.eq.s32.totalorder %s30, 0
      %p244 = por %p242, %p243
      %p245 = scmp.ne.s32.totalorder %s234, %s237
      %p246 = scmp.eq.s32.totalorder %s35, 3
      %p247 = por %p245, %p246
      %p248 = scmp.ne.s32.totalorder %s237, %s238
      %p249 = scmp.eq.s32.totalorder %s35, 0
      %p250 = por %p248, %p249
      %p251 = scmp.ne.s32.totalorder %s237, %s238
      %p252 = scmp.eq.s32.totalorder %s36, 3
      %p253 = por %p251, %p252
      %p255 = scmp.ne.s32.totalorder %s238, %s254
      %p256 = scmp.eq.s32.totalorder %s36, 0
      %p257 = por %p255, %p256
      %s258 = ssub.s32 %s38, %s45
      %p259 = scmp.eq.s32.totalorder %s258, 0
      %s261 = sadd.s32 %s260, 1
      %s262 = scalar_select %p259, %s260, %s261
      %p265 = pneg %p259
      %p266 = scmp.eq.s32.totalorder %s30, 3
      %p267 = por %p265, %p266
      %p268 = scmp.ne.s32.totalorder %s260, %s263
      %p269 = scmp.eq.s32.totalorder %s30, 0
      %p270 = por %p268, %p269
      %p271 = scmp.ne.s32.totalorder %s260, %s263
      %p272 = scmp.eq.s32.totalorder %s35, 3
      %p273 = por %p271, %p272
      %p274 = scmp.ne.s32.totalorder %s263, %s264
      %p275 = scmp.eq.s32.totalorder %s35, 0
      %p276 = por %p274, %p275
      %p277 = scmp.ne.s32.totalorder %s263, %s264
      %p278 = scmp.eq.s32.totalorder %s36, 3
      %p279 = por %p277, %p278
      %p281 = scmp.ne.s32.totalorder %s264, %s280
      %p282 = scmp.eq.s32.totalorder %s36, 0
      %p283 = por %p281, %p282
      %s284 = ssub.s32 %s38, %s45
      %p285 = scmp.eq.s32.totalorder %s284, 0
      %s287 = sadd.s32 %s286, 1
      %s288 = scalar_select %p285, %s286, %s287
      %p291 = pneg %p285
      %p292 = scmp.eq.s32.totalorder %s30, 3
      %p293 = por %p291, %p292
      %p294 = scmp.ne.s32.totalorder %s286, %s289
      %p295 = scmp.eq.s32.totalorder %s30, 0
      %p296 = por %p294, %p295
      %p297 = scmp.ne.s32.totalorder %s286, %s289
      %p298 = scmp.eq.s32.totalorder %s35, 3
      %p299 = por %p297, %p298
      %p300 = scmp.ne.s32.totalorder %s289, %s290
      %p301 = scmp.eq.s32.totalorder %s35, 0
      %p302 = por %p300, %p301
      %p303 = scmp.ne.s32.totalorder %s289, %s290
      %p304 = scmp.eq.s32.totalorder %s36, 3
      %p305 = por %p303, %p304
      %p307 = scmp.ne.s32.totalorder %s290, %s306
      %p308 = scmp.eq.s32.totalorder %s36, 0
      %p309 = por %p307, %p308
      %s310 = ssub.s32 %s38, %s45
      %p311 = scmp.eq.s32.totalorder %s310, 0
      %s313 = sadd.s32 %s312, 1
      %s314 = scalar_select %p311, %s312, %s313
      %p317 = pneg %p311
      %p318 = scmp.eq.s32.totalorder %s30, 3
      %p319 = por %p317, %p318
      %p320 = scmp.ne.s32.totalorder %s312, %s315
      %p321 = scmp.eq.s32.totalorder %s30, 0
      %p322 = por %p320, %p321
      %p323 = scmp.ne.s32.totalorder %s312, %s315
      %p324 = scmp.eq.s32.totalorder %s35, 3
      %p325 = por %p323, %p324
      %p326 = scmp.ne.s32.totalorder %s315, %s316
      %p327 = scmp.eq.s32.totalorder %s35, 0
      %p328 = por %p326, %p327
      %p329 = scmp.ne.s32.totalorder %s315, %s316
      %p330 = scmp.eq.s32.totalorder %s36, 3
      %p331 = por %p329, %p330
      %p333 = scmp.ne.s32.totalorder %s316, %s332
      %p334 = scmp.eq.s32.totalorder %s36, 0
      %p335 = por %p333, %p334
      %s336 = ssub.s32 %s38, %s45
      %p337 = scmp.eq.s32.totalorder %s336, 0
      %s339 = sadd.s32 %s338, 1
      %s340 = scalar_select %p337, %s338, %s339
      %p343 = pneg %p337
      %p344 = scmp.eq.s32.totalorder %s30, 3
      %p345 = por %p343, %p344
      %p346 = scmp.ne.s32.totalorder %s338, %s341
      %p347 = scmp.eq.s32.totalorder %s30, 0
      %p348 = por %p346, %p347
      %p349 = scmp.ne.s32.totalorder %s338, %s341
      %p350 = scmp.eq.s32.totalorder %s35, 3
      %p351 = por %p349, %p350
      %p352 = scmp.ne.s32.totalorder %s341, %s342
      %p353 = scmp.eq.s32.totalorder %s35, 0
      %p354 = por %p352, %p353
      %p355 = scmp.ne.s32.totalorder %s341, %s342
      %p356 = scmp.eq.s32.totalorder %s36, 3
      %p357 = por %p355, %p356
      %p359 = scmp.ne.s32.totalorder %s342, %s358
      %p360 = scmp.eq.s32.totalorder %s36, 0
      %p361 = por %p359, %p360
      %s362 = ssub.s32 %s38, %s45
      %p363 = scmp.eq.s32.totalorder %s362, 0
      %s365 = sadd.s32 %s364, 1
      %s366 = scalar_select %p363, %s364, %s365
      %p369 = pneg %p363
      %p370 = scmp.eq.s32.totalorder %s30, 3
      %p371 = por %p369, %p370
      %p372 = scmp.ne.s32.totalorder %s364, %s367
      %p373 = scmp.eq.s32.totalorder %s30, 0
      %p374 = por %p372, %p373
      %p375 = scmp.ne.s32.totalorder %s364, %s367
      %p376 = scmp.eq.s32.totalorder %s35, 3
      %p377 = por %p375, %p376
      %p378 = scmp.ne.s32.totalorder %s367, %s368
      %p379 = scmp.eq.s32.totalorder %s35, 0
      %p380 = por %p378, %p379
      %p381 = scmp.ne.s32.totalorder %s367, %s368
      %p382 = scmp.eq.s32.totalorder %s36, 3
      %p383 = por %p381, %p382
      %p385 = scmp.ne.s32.totalorder %s368, %s384
      %p386 = scmp.eq.s32.totalorder %s36, 0
      %p387 = por %p385, %p386
      %s388 = ssub.s32 %s38, %s45
      %p389 = scmp.eq.s32.totalorder %s388, 0
      %s391 = sadd.s32 %s390, 1
      %s392 = scalar_select %p389, %s390, %s391
      %p395 = pneg %p389
      %p396 = scmp.eq.s32.totalorder %s30, 3
      %p397 = por %p395, %p396
      %p398 = scmp.ne.s32.totalorder %s390, %s393
      %p399 = scmp.eq.s32.totalorder %s30, 0
      %p400 = por %p398, %p399
      %p401 = scmp.ne.s32.totalorder %s390, %s393
      %p402 = scmp.eq.s32.totalorder %s35, 3
      %p403 = por %p401, %p402
      %p404 = scmp.ne.s32.totalorder %s393, %s394
      %p405 = scmp.eq.s32.totalorder %s35, 0
      %p406 = por %p404, %p405
      %p407 = scmp.ne.s32.totalorder %s393, %s394
      %p408 = scmp.eq.s32.totalorder %s36, 3
      %p409 = por %p407, %p408
      %p411 = scmp.ne.s32.totalorder %s394, %s410
      %p412 = scmp.eq.s32.totalorder %s36, 0
      %p413 = por %p411, %p412
      %s414 = ssub.s32 %s38, %s45
      %p415 = scmp.eq.s32.totalorder %s414, 0
      %s417 = sadd.s32 %s416, 1
      %s418 = scalar_select %p415, %s416, %s417
      %p421 = pneg %p415
      %p422 = scmp.eq.s32.totalorder %s30, 3
      %p423 = por %p421, %p422
      %p424 = scmp.ne.s32.totalorder %s416, %s419
      %p425 = scmp.eq.s32.totalorder %s30, 0
      %p426 = por %p424, %p425
      %p427 = scmp.ne.s32.totalorder %s416, %s419
      %p428 = scmp.eq.s32.totalorder %s35, 3
      %p429 = por %p427, %p428
      %p430 = scmp.ne.s32.totalorder %s419, %s420
      %p431 = scmp.eq.s32.totalorder %s35, 0
      %p432 = por %p430, %p431
      %p433 = scmp.ne.s32.totalorder %s419, %s420
      %p434 = scmp.eq.s32.totalorder %s36, 3
      %p435 = por %p433, %p434
      %p437 = scmp.ne.s32.totalorder %s420, %s436
      %p438 = scmp.eq.s32.totalorder %s36, 0
      %p439 = por %p437, %p438
      %s440 = ssub.s32 %s38, %s45
      %p441 = scmp.eq.s32.totalorder %s440, 0
      %s443 = sadd.s32 %s442, 1
      %s444 = scalar_select %p441, %s442, %s443
      %p447 = pneg %p441
      %p448 = scmp.eq.s32.totalorder %s30, 3
      %p449 = por %p447, %p448
      %p450 = scmp.ne.s32.totalorder %s442, %s445
      %p451 = scmp.eq.s32.totalorder %s30, 0
      %p452 = por %p450, %p451
      %p453 = scmp.ne.s32.totalorder %s442, %s445
      %p454 = scmp.eq.s32.totalorder %s35, 3
      %p455 = por %p453, %p454
      %p456 = scmp.ne.s32.totalorder %s445, %s446
      %p457 = scmp.eq.s32.totalorder %s35, 0
      %p458 = por %p456, %p457
      %p459 = scmp.ne.s32.totalorder %s445, %s446
      %p460 = scmp.eq.s32.totalorder %s36, 3
      %p461 = por %p459, %p460
      %p463 = scmp.ne.s32.totalorder %s446, %s462
      %p464 = scmp.eq.s32.totalorder %s36, 0
      %p465 = por %p463, %p464
      %s466 = ssub.s32 %s38, %s45
      %p467 = scmp.eq.s32.totalorder %s466, 0
      %s469 = sadd.s32 %s468, 1
      %s470 = scalar_select %p467, %s468, %s469
      %p473 = pneg %p467
      %p474 = scmp.eq.s32.totalorder %s30, 3
      %p475 = por %p473, %p474
      %p476 = scmp.ne.s32.totalorder %s468, %s471
      %p477 = scmp.eq.s32.totalorder %s30, 0
      %p478 = por %p476, %p477
      %p479 = scmp.ne.s32.totalorder %s468, %s471
      %p480 = scmp.eq.s32.totalorder %s35, 3
      %p481 = por %p479, %p480
      %p482 = scmp.ne.s32.totalorder %s471, %s472
      %p483 = scmp.eq.s32.totalorder %s35, 0
      %p484 = por %p482, %p483
      %p485 = scmp.ne.s32.totalorder %s471, %s472
      %p486 = scmp.eq.s32.totalorder %s36, 3
      %p487 = por %p485, %p486
      %p489 = scmp.ne.s32.totalorder %s472, %s488
      %p490 = scmp.eq.s32.totalorder %s36, 0
      %p491 = por %p489, %p490
      %s492 = ssub.s32 %s38, %s45
      %p493 = scmp.eq.s32.totalorder %s492, 0
      %s495 = sadd.s32 %s494, 1
      %s496 = scalar_select %p493, %s494, %s495
      %p499 = pneg %p493
      %p500 = scmp.eq.s32.totalorder %s30, 3
      %p501 = por %p499, %p500
      %p502 = scmp.ne.s32.totalorder %s494, %s497
      %p503 = scmp.eq.s32.totalorder %s30, 0
      %p504 = por %p502, %p503
      %p505 = scmp.ne.s32.totalorder %s494, %s497
      %p506 = scmp.eq.s32.totalorder %s35, 3
      %p507 = por %p505, %p506
      %p508 = scmp.ne.s32.totalorder %s497, %s498
      %p509 = scmp.eq.s32.totalorder %s35, 0
      %p510 = por %p508, %p509
      %p511 = scmp.ne.s32.totalorder %s497, %s498
      %p512 = scmp.eq.s32.totalorder %s36, 3
      %p513 = por %p511, %p512
      %p515 = scmp.ne.s32.totalorder %s498, %s514
      %p516 = scmp.eq.s32.totalorder %s36, 0
      %p517 = por %p515, %p516
      %s518 = ssub.s32 %s37, %s49
      %p519 = scmp.eq.s32.totalorder %s518, 0
      %s521 = sadd.s32 %s520, 1
      %s522 = scalar_select %p519, %s520, %s521
      %p525 = pneg %p519
      %p526 = scmp.eq.s32.totalorder %s30, 3
      %p527 = por %p525, %p526
      %p528 = scmp.ne.s32.totalorder %s520, %s523
      %p529 = scmp.eq.s32.totalorder %s30, 0
      %p530 = por %p528, %p529
      %p531 = scmp.ne.s32.totalorder %s520, %s523
      %p532 = scmp.eq.s32.totalorder %s35, 3
      %p533 = por %p531, %p532
      %p534 = scmp.ne.s32.totalorder %s523, %s524
      %p535 = scmp.eq.s32.totalorder %s35, 0
      %p536 = por %p534, %p535
      %p537 = scmp.ne.s32.totalorder %s523, %s524
      %p538 = scmp.eq.s32.totalorder %s36, 3
      %p539 = por %p537, %p538
      %p541 = scmp.ne.s32.totalorder %s524, %s540
      %p542 = scmp.eq.s32.totalorder %s36, 0
      %p543 = por %p541, %p542
      %p544 = scmp.le.s32.totalorder 1, %s30
      %p545 = scmp.lt.s32.totalorder %s30, 5
      %p546 = pnand %p544, %p545
      %p547 = pneg %p546
      // Predicated region
      $region9: #{tpu_custom_call.1} parent=5 // pred_check
        _
      $region10: #{tpu_custom_call.1} parent=5 // pred_check_branch
        %549 = sbr.rel (%p546) target = $region12
      $region11: #{tpu_custom_call.1} parent=5 // pred_region
        %s550 = ssub.s32 %s30, 1
      $region12: #{tpu_custom_call.1} parent=5 // pred_fallthru
        _
      %p551 = scmp.lt.s32.totalorder %s30, 4
      // Predicated region
      $region13: #{tpu_custom_call.1} parent=5 // pred_check
        %p552 = pneg %p551
      $region14: #{tpu_custom_call.1} parent=5 // pred_check_branch
        %554 = sbr.rel (%p552) target = $region16
      $region15: #{tpu_custom_call.1} parent=5 // pred_region
        // Predicated region
        $region17: #{tpu_custom_call.1} parent=15 // pred_check
          %p555 = pneg %p62
        $region18: #{tpu_custom_call.1} parent=15 // pred_check_branch
          %557 = sbr.rel (%p555) target = $region20
        $region19: #{tpu_custom_call.1} parent=15 // pred_region
          %s558 = sand.u32 %s52, 1
          %s559 = scalar_lea.sflag [#allocation3], %s558
          %s560 = sand.u32 %s52, 1
          %s561 = smul.addr %s560, 8
          %s562 = scalar_lea.vmem [#allocation2], %s561
          %s564 = ssub.s32 128, 128
          %565 = vsyncadd %s559, %s564
          %s566 = smul.addr %s37, 128
          %s567 = scalar_lea.hbm %s0, %s566
          %s569 = sshll.u32 %s562, 4
          %s570 = int_to_ptr.vmem [resolvable:$true] %s569
          %572 = dma.hbm_to_vmem [thread:$0]  %s567, 128, %s570, %s559
        $region20: #{tpu_custom_call.1} parent=15 // pred_fallthru
          _
        // Predicated region
        $region21: #{tpu_custom_call.1} parent=15 // pred_check
          %p573 = pneg %p88
        $region22: #{tpu_custom_call.1} parent=15 // pred_check_branch
          %575 = sbr.rel (%p573) target = $region24
        $region23: #{tpu_custom_call.1} parent=15 // pred_region
          %p576 = scmp.lt.s32.totalorder %s37, 1
          %s577 = scalar_select %p576, %s37, 1
          %s578 = scalar_lea.vmem %s1, %s577
        $region24: #{tpu_custom_call.1} parent=15 // pred_fallthru
          _
        // Predicated region
        $region25: #{tpu_custom_call.1} parent=15 // pred_check
          %p579 = pneg %p114
        $region26: #{tpu_custom_call.1} parent=15 // pred_check_branch
          %581 = sbr.rel (%p579) target = $region28
        $region27: #{tpu_custom_call.1} parent=15 // pred_region
          %p582 = scmp.lt.s32.totalorder %s38, 1
          %s583 = scalar_select %p582, %s38, 1
          %s584 = smul.addr %s583, 4
          %s585 = smul.addr %s584, 4
          %s586 = scalar_lea.vmem %s2, %s585
        $region28: #{tpu_custom_call.1} parent=15 // pred_fallthru
          _
        // Predicated region
        $region29: #{tpu_custom_call.1} parent=15 // pred_check
          %p587 = pneg %p140
        $region30: #{tpu_custom_call.1} parent=15 // pred_check_branch
          %589 = sbr.rel (%p587) target = $region32
        $region31: #{tpu_custom_call.1} parent=15 // pred_region
          %p590 = scmp.lt.s32.totalorder %s38, 1
          %s591 = scalar_select %p590, %s38, 1
          %s592 = smul.addr %s591, 4
          %s593 = smul.addr %s592, 4
          %s594 = scalar_lea.vmem %s3, %s593
        $region32: #{tpu_custom_call.1} parent=15 // pred_fallthru
          _
        // Predicated region
        $region33: #{tpu_custom_call.1} parent=15 // pred_check
          %p595 = pneg %p166
        $region34: #{tpu_custom_call.1} parent=15 // pred_check_branch
          %597 = sbr.rel (%p595) target = $region36
        $region35: #{tpu_custom_call.1} parent=15 // pred_region
          %p598 = scmp.lt.s32.totalorder %s38, 1
          %s599 = scalar_select %p598, %s38, 1
          %s600 = smul.addr %s599, 4
          %s601 = smul.addr %s600, 4
          %s602 = scalar_lea.vmem %s4, %s601
        $region36: #{tpu_custom_call.1} parent=15 // pred_fallthru
          _
        // Predicated region
        $region37: #{tpu_custom_call.1} parent=15 // pred_check
          %p603 = pneg %p192
        $region38: #{tpu_custom_call.1} parent=15 // pred_check_branch
          %605 = sbr.rel (%p603) target = $region40
        $region39: #{tpu_custom_call.1} parent=15 // pred_region
          %p606 = scmp.lt.s32.totalorder %s38, 1
          %s607 = scalar_select %p606, %s38, 1
          %s608 = scalar_lea.vmem %s5, %s607
        $region40: #{tpu_custom_call.1} parent=15 // pred_fallthru
          _
        // Predicated region
        $region41: #{tpu_custom_call.1} parent=15 // pred_check
          %p609 = pneg %p218
        $region42: #{tpu_custom_call.1} parent=15 // pred_check_branch
          %611 = sbr.rel (%p609) target = $region44
        $region43: #{tpu_custom_call.1} parent=15 // pred_region
          %p612 = scmp.lt.s32.totalorder %s38, 1
          %s613 = scalar_select %p612, %s38, 1
          %s614 = scalar_lea.vmem %s6, %s613
        $region44: #{tpu_custom_call.1} parent=15 // pred_fallthru
          _
        // Predicated region
        $region45: #{tpu_custom_call.1} parent=15 // pred_check
          %p615 = pneg %p244
        $region46: #{tpu_custom_call.1} parent=15 // pred_check_branch
          %617 = sbr.rel (%p615) target = $region48
        $region47: #{tpu_custom_call.1} parent=15 // pred_region
          %p618 = scmp.lt.s32.totalorder %s38, 1
          %s619 = scalar_select %p618, %s38, 1
          %s620 = scalar_lea.vmem %s7, %s619
        $region48: #{tpu_custom_call.1} parent=15 // pred_fallthru
          _
        // Predicated region
        $region49: #{tpu_custom_call.1} parent=15 // pred_check
          %p621 = pneg %p270
        $region50: #{tpu_custom_call.1} parent=15 // pred_check_branch
          %623 = sbr.rel (%p621) target = $region52
        $region51: #{tpu_custom_call.1} parent=15 // pred_region
          %p624 = scmp.lt.s32.totalorder %s38, 1
          %s625 = scalar_select %p624, %s38, 1
          %s626 = smul.addr %s625, 4
          %s627 = smul.addr %s626, 4
          %s628 = scalar_lea.vmem %s8, %s627
        $region52: #{tpu_custom_call.1} parent=15 // pred_fallthru
          _
        // Predicated region
        $region53: #{tpu_custom_call.1} parent=15 // pred_check
          %p629 = pneg %p296
        $region54: #{tpu_custom_call.1} parent=15 // pred_check_branch
          %631 = sbr.rel (%p629) target = $region56
        $region55: #{tpu_custom_call.1} parent=15 // pred_region
          %p632 = scmp.lt.s32.totalorder %s38, 1
          %s633 = scalar_select %p632, %s38, 1
          %s634 = scalar_lea.vmem %s9, %s633
        $region56: #{tpu_custom_call.1} parent=15 // pred_fallthru
          _
        // Predicated region
        $region57: #{tpu_custom_call.1} parent=15 // pred_check
          %p635 = pneg %p322
        $region58: #{tpu_custom_call.1} parent=15 // pred_check_branch
          %637 = sbr.rel (%p635) target = $region60
        $region59: #{tpu_custom_call.1} parent=15 // pred_region
          %p638 = scmp.lt.s32.totalorder %s38, 1
          %s639 = scalar_select %p638, %s38, 1
          %s640 = scalar_lea.vmem %s10, %s639
        $region60: #{tpu_custom_call.1} parent=15 // pred_fallthru
          _
        // Predicated region
        $region61: #{tpu_custom_call.1} parent=15 // pred_check
          %p641 = pneg %p348
        $region62: #{tpu_custom_call.1} parent=15 // pred_check_branch
          %643 = sbr.rel (%p641) target = $region64
        $region63: #{tpu_custom_call.1} parent=15 // pred_region
          %p644 = scmp.lt.s32.totalorder %s38, 1
          %s645 = scalar_select %p644, %s38, 1
          %s646 = scalar_lea.vmem %s11, %s645
        $region64: #{tpu_custom_call.1} parent=15 // pred_fallthru
          _
        // Predicated region
        $region65: #{tpu_custom_call.1} parent=15 // pred_check
          %p647 = pneg %p374
        $region66: #{tpu_custom_call.1} parent=15 // pred_check_branch
          %649 = sbr.rel (%p647) target = $region68
        $region67: #{tpu_custom_call.1} parent=15 // pred_region
          %p650 = scmp.lt.s32.totalorder %s38, 1
          %s651 = scalar_select %p650, %s38, 1
          %s652 = smul.addr %s651, 4
          %s653 = smul.addr %s652, 4
          %s654 = scalar_lea.vmem %s12, %s653
        $region68: #{tpu_custom_call.1} parent=15 // pred_fallthru
          _
        // Predicated region
        $region69: #{tpu_custom_call.1} parent=15 // pred_check
          %p655 = pneg %p400
        $region70: #{tpu_custom_call.1} parent=15 // pred_check_branch
          %657 = sbr.rel (%p655) target = $region72
        $region71: #{tpu_custom_call.1} parent=15 // pred_region
          %p658 = scmp.lt.s32.totalorder %s38, 1
          %s659 = scalar_select %p658, %s38, 1
          %s660 = scalar_lea.vmem %s13, %s659
        $region72: #{tpu_custom_call.1} parent=15 // pred_fallthru
          _
        // Predicated region
        $region73: #{tpu_custom_call.1} parent=15 // pred_check
          %p661 = pneg %p426
        $region74: #{tpu_custom_call.1} parent=15 // pred_check_branch
          %663 = sbr.rel (%p661) target = $region76
        $region75: #{tpu_custom_call.1} parent=15 // pred_region
          %p664 = scmp.lt.s32.totalorder %s38, 1
          %s665 = scalar_select %p664, %s38, 1
          %s666 = smul.addr %s665, 16
          %s667 = smul.addr %s666, 4
          %s668 = scalar_lea.vmem %s14, %s667
        $region76: #{tpu_custom_call.1} parent=15 // pred_fallthru
          _
        // Predicated region
        $region77: #{tpu_custom_call.1} parent=15 // pred_check
          %p669 = pneg %p452
        $region78: #{tpu_custom_call.1} parent=15 // pred_check_branch
          %671 = sbr.rel (%p669) target = $region80
        $region79: #{tpu_custom_call.1} parent=15 // pred_region
          %p672 = scmp.lt.s32.totalorder %s38, 1
          %s673 = scalar_select %p672, %s38, 1
          %s674 = scalar_lea.vmem %s15, %s673
        $region80: #{tpu_custom_call.1} parent=15 // pred_fallthru
          _
        // Predicated region
        $region81: #{tpu_custom_call.1} parent=15 // pred_check
          %p675 = pneg %p478
        $region82: #{tpu_custom_call.1} parent=15 // pred_check_branch
          %677 = sbr.rel (%p675) target = $region84
        $region83: #{tpu_custom_call.1} parent=15 // pred_region
          %p678 = scmp.lt.s32.totalorder %s38, 1
          %s679 = scalar_select %p678, %s38, 1
          %s680 = scalar_lea.vmem %s16, %s679
        $region84: #{tpu_custom_call.1} parent=15 // pred_fallthru
          _
        // Predicated region
        $region85: #{tpu_custom_call.1} parent=15 // pred_check
          %p681 = pneg %p504
        $region86: #{tpu_custom_call.1} parent=15 // pred_check_branch
          %683 = sbr.rel (%p681) target = $region88
        $region87: #{tpu_custom_call.1} parent=15 // pred_region
          %p684 = scmp.lt.s32.totalorder %s38, 1
          %s685 = scalar_select %p684, %s38, 1
          %s686 = scalar_lea.vmem %s17, %s685
        $region88: #{tpu_custom_call.1} parent=15 // pred_fallthru
          _
      $region16: #{tpu_custom_call.1} parent=5 // pred_fallthru
        _
      %p687 = scmp.le.s32.totalorder 1, %s30
      %p688 = scmp.lt.s32.totalorder %s30, 5
      %p689 = pnand %p687, %p688
      %p690 = pneg %p689
      // Predicated region
      $region89: #{tpu_custom_call.1} parent=5 // pred_check
        _
      $region90: #{tpu_custom_call.1} parent=5 // pred_check_branch
        %692 = sbr.rel (%p689) target = $region92
      $region91: #{tpu_custom_call.1} parent=5 // pred_region
        %s693 = ssub.s32 %s30, 1
        %s694 = sand.u32 %s55, 1
        %s695 = scalar_lea.sflag [#allocation3], %s694
        %s696 = sand.u32 %s55, 1
        %s697 = smul.addr %s696, 8
        %s698 = scalar_lea.vmem [#allocation2], %s697
        // Predicated region
        $region93: #{tpu_custom_call.1} parent=91 // pred_check
          %p699 = pneg %p68
        $region94: #{tpu_custom_call.1} parent=91 // pred_check_branch
          %701 = sbr.rel (%p699) target = $region96
        $region95: #{tpu_custom_call.1} parent=91 // pred_region
          %702 = dma.done %s695, 128
        $region96: #{tpu_custom_call.1} parent=91 // pred_fallthru
          _
        %s703 = sand.u32 %s55, 1
        %s704 = scalar_lea.sflag [#allocation3], %s703
        %s705 = sand.u32 %s55, 1
        %s706 = smul.addr %s705, 8
        %s707 = scalar_lea.vmem [#allocation2], %s706
        %p708 = pneg %p68
        %p709 = pneg %p65
        %p710 = scmp.lt.s32.totalorder %s39, 1
        %s711 = scalar_select %p710, %s39, 1
        %s712 = scalar_lea.vmem %s1, %s711
        %p713 = pneg %p94
        %p714 = pneg %p91
        %p715 = scmp.lt.s32.totalorder %s40, 1
        %s716 = scalar_select %p715, %s40, 1
        %s717 = smul.addr %s716, 4
        %s718 = smul.addr %s717, 4
        %s719 = scalar_lea.vmem %s2, %s718
        %p720 = pneg %p120
        %p721 = pneg %p117
        %p722 = scmp.lt.s32.totalorder %s40, 1
        %s723 = scalar_select %p722, %s40, 1
        %s724 = smul.addr %s723, 4
        %s725 = smul.addr %s724, 4
        %s726 = scalar_lea.vmem %s3, %s725
        %p727 = pneg %p146
        %p728 = pneg %p143
        %p729 = scmp.lt.s32.totalorder %s40, 1
        %s730 = scalar_select %p729, %s40, 1
        %s731 = smul.addr %s730, 4
        %s732 = smul.addr %s731, 4
        %s733 = scalar_lea.vmem %s4, %s732
        %p734 = pneg %p172
        %p735 = pneg %p169
        %p736 = scmp.lt.s32.totalorder %s40, 1
        %s737 = scalar_select %p736, %s40, 1
        %s738 = scalar_lea.vmem %s5, %s737
        %p739 = pneg %p198
        %p740 = pneg %p195
        %p741 = scmp.lt.s32.totalorder %s40, 1
        %s742 = scalar_select %p741, %s40, 1
        %s743 = scalar_lea.vmem %s6, %s742
        %p744 = pneg %p224
        %p745 = pneg %p221
        %p746 = scmp.lt.s32.totalorder %s40, 1
        %s747 = scalar_select %p746, %s40, 1
        %s748 = scalar_lea.vmem %s7, %s747
        %p749 = pneg %p250
        %p750 = pneg %p247
        %p751 = scmp.lt.s32.totalorder %s40, 1
        %s752 = scalar_select %p751, %s40, 1
        %s753 = smul.addr %s752, 4
        %s754 = smul.addr %s753, 4
        %s755 = scalar_lea.vmem %s8, %s754
        %p756 = pneg %p276
        %p757 = pneg %p273
        %p758 = scmp.lt.s32.totalorder %s40, 1
        %s759 = scalar_select %p758, %s40, 1
        %s760 = scalar_lea.vmem %s9, %s759
        %p761 = pneg %p302
        %p762 = pneg %p299
        %p763 = scmp.lt.s32.totalorder %s40, 1
        %s764 = scalar_select %p763, %s40, 1
        %s765 = scalar_lea.vmem %s10, %s764
        %p766 = pneg %p328
        %p767 = pneg %p325
        %p768 = scmp.lt.s32.totalorder %s40, 1
        %s769 = scalar_select %p768, %s40, 1
        %s770 = scalar_lea.vmem %s11, %s769
        %p771 = pneg %p354
        %p772 = pneg %p351
        %p773 = scmp.lt.s32.totalorder %s40, 1
        %s774 = scalar_select %p773, %s40, 1
        %s775 = smul.addr %s774, 4
        %s776 = smul.addr %s775, 4
        %s777 = scalar_lea.vmem %s12, %s776
        %p778 = pneg %p380
        %p779 = pneg %p377
        %p780 = scmp.lt.s32.totalorder %s40, 1
        %s781 = scalar_select %p780, %s40, 1
        %s782 = scalar_lea.vmem %s13, %s781
        %p783 = pneg %p406
        %p784 = pneg %p403
        %p785 = scmp.lt.s32.totalorder %s40, 1
        %s786 = scalar_select %p785, %s40, 1
        %s787 = smul.addr %s786, 16
        %s788 = smul.addr %s787, 4
        %s789 = scalar_lea.vmem %s14, %s788
        %p790 = pneg %p432
        %p791 = pneg %p429
        %p792 = scmp.lt.s32.totalorder %s40, 1
        %s793 = scalar_select %p792, %s40, 1
        %s794 = scalar_lea.vmem %s15, %s793
        %p795 = pneg %p458
        %p796 = pneg %p455
        %p797 = scmp.lt.s32.totalorder %s40, 1
        %s798 = scalar_select %p797, %s40, 1
        %s799 = scalar_lea.vmem %s16, %s798
        %p800 = pneg %p484
        %p801 = pneg %p481
        %p802 = scmp.lt.s32.totalorder %s40, 1
        %s803 = scalar_select %p802, %s40, 1
        %s804 = scalar_lea.vmem %s17, %s803
        %p805 = pneg %p510
        %p806 = pneg %p507
        %p807 = pneg %p536
        %p808 = pneg %p533
        %s809 = sand.u32 %s523, 1
        %s810 = scalar_lea.sflag [#allocation4], %s809
        %s811 = sand.u32 %s523, 1
        %s812 = smul.addr %s811, 8
        %s813 = scalar_lea.vmem [#allocation5], %s812
        %p814 = scmp.lt.s32.totalorder %s39, 1
        %s815 = scalar_select %p814, %s39, 1
        %s816 = scalar_lea.vmem %s1, %s815
        %p817 = scmp.lt.s32.totalorder %s40, 1
        %s818 = scalar_select %p817, %s40, 1
        %s819 = smul.addr %s818, 4
        %s820 = smul.addr %s819, 4
        %s821 = scalar_lea.vmem %s2, %s820
        %p822 = scmp.lt.s32.totalorder %s40, 1
        %s823 = scalar_select %p822, %s40, 1
        %s824 = smul.addr %s823, 4
        %s825 = smul.addr %s824, 4
        %s826 = scalar_lea.vmem %s3, %s825
        %p827 = scmp.lt.s32.totalorder %s40, 1
        %s828 = scalar_select %p827, %s40, 1
        %s829 = smul.addr %s828, 4
        %s830 = smul.addr %s829, 4
        %s831 = scalar_lea.vmem %s4, %s830
        %p832 = scmp.lt.s32.totalorder %s40, 1
        %s833 = scalar_select %p832, %s40, 1
        %s834 = scalar_lea.vmem %s5, %s833
        %p835 = scmp.lt.s32.totalorder %s40, 1
        %s836 = scalar_select %p835, %s40, 1
        %s837 = scalar_lea.vmem %s6, %s836
        %p838 = scmp.lt.s32.totalorder %s40, 1
        %s839 = scalar_select %p838, %s40, 1
        %s840 = scalar_lea.vmem %s7, %s839
        %p841 = scmp.lt.s32.totalorder %s40, 1
        %s842 = scalar_select %p841, %s40, 1
        %s843 = smul.addr %s842, 4
        %s844 = smul.addr %s843, 4
        %s845 = scalar_lea.vmem %s8, %s844
        %p846 = scmp.lt.s32.totalorder %s40, 1
        %s847 = scalar_select %p846, %s40, 1
        %s848 = scalar_lea.vmem %s9, %s847
        %p849 = scmp.lt.s32.totalorder %s40, 1
        %s850 = scalar_select %p849, %s40, 1
        %s851 = scalar_lea.vmem %s10, %s850
        %p852 = scmp.lt.s32.totalorder %s40, 1
        %s853 = scalar_select %p852, %s40, 1
        %s854 = scalar_lea.vmem %s11, %s853
        %p855 = scmp.lt.s32.totalorder %s40, 1
        %s856 = scalar_select %p855, %s40, 1
        %s857 = smul.addr %s856, 4
        %s858 = smul.addr %s857, 4
        %s859 = scalar_lea.vmem %s12, %s858
        %p860 = scmp.lt.s32.totalorder %s40, 1
        %s861 = scalar_select %p860, %s40, 1
        %s862 = scalar_lea.vmem %s13, %s861
        %p863 = scmp.lt.s32.totalorder %s40, 1
        %s864 = scalar_select %p863, %s40, 1
        %s865 = smul.addr %s864, 16
        %s866 = smul.addr %s865, 4
        %s867 = scalar_lea.vmem %s14, %s866
        %p868 = scmp.lt.s32.totalorder %s40, 1
        %s869 = scalar_select %p868, %s40, 1
        %s870 = scalar_lea.vmem %s15, %s869
        %p871 = scmp.lt.s32.totalorder %s40, 1
        %s872 = scalar_select %p871, %s40, 1
        %s873 = scalar_lea.vmem %s16, %s872
        %p874 = scmp.lt.s32.totalorder %s40, 1
        %s875 = scalar_select %p874, %s40, 1
        %s876 = scalar_lea.vmem %s17, %s875
        %p878 = scmp.eq.s32.totalorder %s40, 0
        // Predicated region
        $region97: #{tpu_custom_call.1} parent=91 // pred_check
          %p879 = pneg %p878
        $region98: #{tpu_custom_call.1} parent=91 // pred_check_branch
          %881 = sbr.rel (%p879) target = $region100
        $region99: #{tpu_custom_call.1} parent=91 // pred_region
          %v882 = vld [vmem:[%s698] sm:$0xff]
          %vm883 = vcmask 261120
          %884 = vst.msk [vmem:[%s813] sm:$0xff] %vm883, %v882
        $region100: #{tpu_custom_call.1} parent=91 // pred_fallthru
          _
        %v885 = vld [vmem:[%s813] sm:$0xff]
        %v886 = vpack.c.bf16 %v885, %v885
        %v887 = vld [vmem:[%s816] sm:$0x1]
        %v888 = vld [vmem:[%s821] sm:$0xf]
        %v889 = vld [vmem:[%s821 + $0x4] sm:$0xf]
        %v890 = vld [vmem:[%s821 + $0x8] sm:$0xf]
        %v891 = vld [vmem:[%s821 + $0xc] sm:$0xf]
        %v892 = vld [vmem:[%s834] sm:$0x1]
        %v894 = vlaneseq
        %v895 = vshrl.u32 %v894, 7
        %v896 = vsub.s32 0, %v895
        %v897 = vrot.slane %v892, %v896
        %v903 = vunpack.c.l.b16 %v888
        %v904 = vunpack.c.l.b16 %v889
        %v905 = vunpack.c.l.b16 %v890
        %v906 = vunpack.c.l.b16 %v891
        %v907 = vpack.c.b16 %v904, %v903
        %v908 = vpack.c.b16 %v906, %v905
        %vm911 = vcmask 261120
        %v913 = vsel %vm911, %v886, 0
        %915 = vmatprep.subr.bf16.mxu0 0
        %916 = vmatpush1.bf16.msra.mxu0 %v907
        %917 = vmatprep.subr.bf16.mxu0 0
        %918 = vmatpush1.bf16.msra.mxu0 %v908
        %919 = vmatprep.subr.bf16.mxu0 0
        %920 = vmatpush1.bf16.msra.mxu0 0
        %921 = vmatprep.subr.bf16.mxu0 0
        %922 = vmatpush1.bf16.msra.mxu0 0
        %923 = vmatprep.subr.bf16.mxu0 0
        %924 = vmatpush1.bf16.msra.mxu0 0
        %925 = vmatprep.subr.bf16.mxu0 0
        %926 = vmatpush1.bf16.msra.mxu0 0
        %927 = vmatprep.subr.bf16.mxu0 0
        %928 = vmatpush1.bf16.msra.mxu0 0
        %929 = vmatprep.subr.bf16.mxu0 0
        %930 = vmatpush1.bf16.msra.mxu0 0
        %931 = vmatprep.subr.bf16.mxu0 0
        %932 = vmatpush1.bf16.msra.mxu0 0
        %933 = vmatprep.subr.bf16.mxu0 0
        %934 = vmatpush1.bf16.msra.mxu0 0
        %935 = vmatprep.subr.bf16.mxu0 0
        %936 = vmatpush1.bf16.msra.mxu0 0
        %937 = vmatprep.subr.bf16.mxu0 0
        %938 = vmatpush1.bf16.msra.mxu0 0
        %939 = vmatprep.subr.bf16.mxu0 0
        %940 = vmatpush1.bf16.msra.mxu0 0
        %941 = vmatprep.subr.bf16.mxu0 0
        %942 = vmatpush1.bf16.msra.mxu0 0
        %943 = vmatprep.subr.bf16.mxu0 0
        %944 = vmatpush1.bf16.msra.mxu0 0
        %945 = vmatprep.subr.bf16.mxu0 0
        %946 = vmatpush1.bf16.msra.mxu0 0
        %947 = vmatprep.mubr.bf16.mxu0 0
        %948 = vmatmul.mubr.bf16.gmra.mrb[0].mxu0 %v913
        %v949 = vpop.f32.mrb[0].mxu0
        %v950 = vadd.f32 %v897, %v949
        %v951 = vpop.f32.mrb[0].mxu0
        %v952 = vpop.f32.mrb[0].mxu0
        %v953 = vpop.f32.mrb[0].mxu0
        %954 = vdwg.mxu0
        %v955 = vld [vmem:[%s826] sm:$0xf]
        %v956 = vld [vmem:[%s826 + $0x4] sm:$0xf]
        %v957 = vld [vmem:[%s826 + $0x8] sm:$0xf]
        %v958 = vld [vmem:[%s826 + $0xc] sm:$0xf]
        %v959 = vld [vmem:[%s837] sm:$0x1]
        %v961 = vlaneseq
        %v962 = vshrl.u32 %v961, 7
        %v963 = vsub.s32 0, %v962
        %v964 = vrot.slane %v959, %v963
        %v970 = vunpack.c.l.b16 %v955
        %v971 = vunpack.c.l.b16 %v956
        %v972 = vunpack.c.l.b16 %v957
        %v973 = vunpack.c.l.b16 %v958
        %v974 = vpack.c.b16 %v971, %v970
        %v975 = vpack.c.b16 %v973, %v972
        %978 = vmatprep.subr.bf16.mxu0 0
        %979 = vmatpush1.bf16.msra.mxu0 %v974
        %980 = vmatprep.subr.bf16.mxu0 0
        %981 = vmatpush1.bf16.msra.mxu0 %v975
        %982 = vmatprep.subr.bf16.mxu0 0
        %983 = vmatpush1.bf16.msra.mxu0 0
        %984 = vmatprep.subr.bf16.mxu0 0
        %985 = vmatpush1.bf16.msra.mxu0 0
        %986 = vmatprep.subr.bf16.mxu0 0
        %987 = vmatpush1.bf16.msra.mxu0 0
        %988 = vmatprep.subr.bf16.mxu0 0
        %989 = vmatpush1.bf16.msra.mxu0 0
        %990 = vmatprep.subr.bf16.mxu0 0
        %991 = vmatpush1.bf16.msra.mxu0 0
        %992 = vmatprep.subr.bf16.mxu0 0
        %993 = vmatpush1.bf16.msra.mxu0 0
        %994 = vmatprep.subr.bf16.mxu0 0
        %995 = vmatpush1.bf16.msra.mxu0 0
        %996 = vmatprep.subr.bf16.mxu0 0
        %997 = vmatpush1.bf16.msra.mxu0 0
        %998 = vmatprep.subr.bf16.mxu0 0
        %999 = vmatpush1.bf16.msra.mxu0 0
        %1000 = vmatprep.subr.bf16.mxu0 0
        %1001 = vmatpush1.bf16.msra.mxu0 0
        %1002 = vmatprep.subr.bf16.mxu0 0
        %1003 = vmatpush1.bf16.msra.mxu0 0
        %1004 = vmatprep.subr.bf16.mxu0 0
        %1005 = vmatpush1.bf16.msra.mxu0 0
        %1006 = vmatprep.subr.bf16.mxu0 0
        %1007 = vmatpush1.bf16.msra.mxu0 0
        %1008 = vmatprep.subr.bf16.mxu0 0
        %1009 = vmatpush1.bf16.msra.mxu0 0
        %1010 = vmatprep.mubr.bf16.mxu0 0
        %1011 = vmatmul.mubr.bf16.gmra.mrb[0].mxu0 %v913
        %v1012 = vpop.f32.mrb[0].mxu0
        %v1013 = vadd.f32 %v964, %v1012
        %v1014 = vpop.f32.mrb[0].mxu0
        %v1015 = vpop.f32.mrb[0].mxu0
        %v1016 = vpop.f32.mrb[0].mxu0
        %1017 = vdwg.mxu0
        %v1018 = vld [vmem:[%s831] sm:$0xf]
        %v1019 = vld [vmem:[%s831 + $0x4] sm:$0xf]
        %v1020 = vld [vmem:[%s831 + $0x8] sm:$0xf]
        %v1021 = vld [vmem:[%s831 + $0xc] sm:$0xf]
        %v1022 = vld [vmem:[%s840] sm:$0x1]
        %v1024 = vlaneseq
        %v1025 = vshrl.u32 %v1024, 7
        %v1026 = vsub.s32 0, %v1025
        %v1027 = vrot.slane %v1022, %v1026
        %v1033 = vunpack.c.l.b16 %v1018
        %v1034 = vunpack.c.l.b16 %v1019
        %v1035 = vunpack.c.l.b16 %v1020
        %v1036 = vunpack.c.l.b16 %v1021
        %v1037 = vpack.c.b16 %v1034, %v1033
        %v1038 = vpack.c.b16 %v1036, %v1035
        %1041 = vmatprep.subr.bf16.mxu0 0
        %1042 = vmatpush1.bf16.msra.mxu0 %v1037
        %1043 = vmatprep.subr.bf16.mxu0 0
        %1044 = vmatpush1.bf16.msra.mxu0 %v1038
        %1045 = vmatprep.subr.bf16.mxu0 0
        %1046 = vmatpush1.bf16.msra.mxu0 0
        %1047 = vmatprep.subr.bf16.mxu0 0
        %1048 = vmatpush1.bf16.msra.mxu0 0
        %1049 = vmatprep.subr.bf16.mxu0 0
        %1050 = vmatpush1.bf16.msra.mxu0 0
        %1051 = vmatprep.subr.bf16.mxu0 0
        %1052 = vmatpush1.bf16.msra.mxu0 0
        %1053 = vmatprep.subr.bf16.mxu0 0
        %1054 = vmatpush1.bf16.msra.mxu0 0
        %1055 = vmatprep.subr.bf16.mxu0 0
        %1056 = vmatpush1.bf16.msra.mxu0 0
        %1057 = vmatprep.subr.bf16.mxu0 0
        %1058 = vmatpush1.bf16.msra.mxu0 0
        %1059 = vmatprep.subr.bf16.mxu0 0
        %1060 = vmatpush1.bf16.msra.mxu0 0
        %1061 = vmatprep.subr.bf16.mxu0 0
        %1062 = vmatpush1.bf16.msra.mxu0 0
        %1063 = vmatprep.subr.bf16.mxu0 0
        %1064 = vmatpush1.bf16.msra.mxu0 0
        %1065 = vmatprep.subr.bf16.mxu0 0
        %1066 = vmatpush1.bf16.msra.mxu0 0
        %1067 = vmatprep.subr.bf16.mxu0 0
        %1068 = vmatpush1.bf16.msra.mxu0 0
        %1069 = vmatprep.subr.bf16.mxu0 0
        %1070 = vmatpush1.bf16.msra.mxu0 0
        %1071 = vmatprep.subr.bf16.mxu0 0
        %1072 = vmatpush1.bf16.msra.mxu0 0
        %1073 = vmatprep.mubr.bf16.mxu0 0
        %1074 = vmatmul.mubr.bf16.gmra.mrb[0].mxu0 %v913
        %v1075 = vpop.f32.mrb[0].mxu0
        %v1076 = vadd.f32 %v1027, %v1075
        %v1077 = vpop.f32.mrb[0].mxu0
        %v1078 = vpop.f32.mrb[0].mxu0
        %v1079 = vpop.f32.mrb[0].mxu0
        %1080 = vdwg.mxu0
        %v1081 = vmul.f32 %v950, 0.35355338
        %1083 = vrot.lane.b32.xlu0 %v1081, 120
        %v1084 = vpop.permute.xlu0 %1083
        %1086 = vrot.lane.b32.xlu0 %v1081, 112
        %v1087 = vpop.permute.xlu0 %1086
        %1089 = vrot.lane.b32.xlu0 %v1081, 104
        %v1090 = vpop.permute.xlu0 %1089
        %v1092 = vcombine.low %v1081, %v1087
        %v1093 = vcombine.high %v1081, %v1087
        %v1095 = vunpack.c.l.s4 1983009808
        %v1096 = vunpack.c.0.s8 %v1095
        %v1097 = vlaneseq
        %v1098 = vshrl.u32 %v1097, 7
        %v1099 = vsub.s32 %v1096, %v1098
        %v1100 = vrot.slane %v1092, %v1099
        %v1102 = vunpack.c.l.s4 1983009808
        %v1103 = vunpack.c.0.s8 %v1102
        %v1104 = vlaneseq
        %v1105 = vshrl.u32 %v1104, 7
        %v1106 = vsub.s32 %v1103, %v1105
        %v1107 = vrot.slane %v1093, %v1106
        %v1108 = vcombine.low %v1084, %v1090
        %v1109 = vcombine.high %v1084, %v1090
        %v1111 = vunpack.c.l.s4 1983009808
        %v1112 = vunpack.c.0.s8 %v1111
        %v1113 = vlaneseq
        %v1114 = vshrl.u32 %v1113, 7
        %v1115 = vsub.s32 %v1112, %v1114
        %v1116 = vrot.slane %v1108, %v1115
        %v1118 = vunpack.c.l.s4 1983009808
        %v1119 = vunpack.c.0.s8 %v1118
        %v1120 = vlaneseq
        %v1121 = vshrl.u32 %v1120, 7
        %v1122 = vsub.s32 %v1119, %v1121
        %v1123 = vrot.slane %v1109, %v1122
        %v1124 = vcombine.low %v1100, %v1116
        %v1125 = vcombine.high %v1100, %v1116
        %v1127 = vunpack.c.l.s4 1934713408
        %v1128 = vunpack.c.0.s8 %v1127
        %v1129 = vlaneseq
        %v1130 = vshrl.u32 %v1129, 7
        %v1131 = vsub.s32 %v1128, %v1130
        %v1132 = vrot.slane %v1124, %v1131
        %v1134 = vunpack.c.l.s4 1934713408
        %v1135 = vunpack.c.0.s8 %v1134
        %v1136 = vlaneseq
        %v1137 = vshrl.u32 %v1136, 7
        %v1138 = vsub.s32 %v1135, %v1137
        %v1139 = vrot.slane %v1125, %v1138
        %v1140 = vcombine.low %v1107, %v1123
        %v1141 = vcombine.high %v1107, %v1123
        %v1143 = vunpack.c.l.s4 1934713408
        %v1144 = vunpack.c.0.s8 %v1143
        %v1145 = vlaneseq
        %v1146 = vshrl.u32 %v1145, 7
        %v1147 = vsub.s32 %v1144, %v1146
        %v1148 = vrot.slane %v1140, %v1147
        %v1150 = vunpack.c.l.s4 1934713408
        %v1151 = vunpack.c.0.s8 %v1150
        %v1152 = vlaneseq
        %v1153 = vshrl.u32 %v1152, 7
        %v1154 = vsub.s32 %v1151, %v1153
        %v1155 = vrot.slane %v1141, %v1154
        %v1156 = vcombine.high %v1132, 0.0
        %v1157 = vcombine.high %v1139, 0.0
        %v1158 = vcombine.high %v1148, 0.0
        %v1159 = vcombine.high %v1155, 0.0
        %v1160 = vcombine.low %v1132, %v1139
        %v1162 = vunpack.c.l.s4 1983009808
        %v1163 = vunpack.c.0.s8 %v1162
        %v1164 = vlaneseq
        %v1165 = vshrl.u32 %v1164, 7
        %v1166 = vsub.s32 %v1163, %v1165
        %v1167 = vrot.slane %v1160, %v1166
        %v1168 = vcombine.low %v1156, %v1157
        %v1170 = vunpack.c.l.s4 1983009808
        %v1171 = vunpack.c.0.s8 %v1170
        %v1172 = vlaneseq
        %v1173 = vshrl.u32 %v1172, 7
        %v1174 = vsub.s32 %v1171, %v1173
        %v1175 = vrot.slane %v1168, %v1174
        %v1176 = vcombine.low %v1148, %v1155
        %v1178 = vunpack.c.l.s4 1983009808
        %v1179 = vunpack.c.0.s8 %v1178
        %v1180 = vlaneseq
        %v1181 = vshrl.u32 %v1180, 7
        %v1182 = vsub.s32 %v1179, %v1181
        %v1183 = vrot.slane %v1176, %v1182
        %v1184 = vcombine.low %v1158, %v1159
        %v1186 = vunpack.c.l.s4 1983009808
        %v1187 = vunpack.c.0.s8 %v1186
        %v1188 = vlaneseq
        %v1189 = vshrl.u32 %v1188, 7
        %v1190 = vsub.s32 %v1187, %v1189
        %v1191 = vrot.slane %v1184, %v1190
        %v1192 = vcombine.low %v1167, %v1175
        %v1193 = vcombine.high %v1167, %v1175
        %v1195 = vunpack.c.l.s4 1934713408
        %v1196 = vunpack.c.0.s8 %v1195
        %v1197 = vlaneseq
        %v1198 = vshrl.u32 %v1197, 7
        %v1199 = vsub.s32 %v1196, %v1198
        %v1200 = vrot.slane %v1192, %v1199
        %v1202 = vunpack.c.l.s4 1934713408
        %v1203 = vunpack.c.0.s8 %v1202
        %v1204 = vlaneseq
        %v1205 = vshrl.u32 %v1204, 7
        %v1206 = vsub.s32 %v1203, %v1205
        %v1207 = vrot.slane %v1193, %v1206
        %v1208 = vcombine.low %v1183, %v1191
        %v1209 = vcombine.high %v1183, %v1191
        %v1211 = vunpack.c.l.s4 1934713408
        %v1212 = vunpack.c.0.s8 %v1211
        %v1213 = vlaneseq
        %v1214 = vshrl.u32 %v1213, 7
        %v1215 = vsub.s32 %v1212, %v1214
        %v1216 = vrot.slane %v1208, %v1215
        %v1218 = vunpack.c.l.s4 1934713408
        %v1219 = vunpack.c.0.s8 %v1218
        %v1220 = vlaneseq
        %v1221 = vshrl.u32 %v1220, 7
        %v1222 = vsub.s32 %v1219, %v1221
        %v1223 = vrot.slane %v1209, %v1222
        %v1224 = vcombine.low %v1200, %v1216
        %v1225 = vcombine.high %v1200, %v1216
        %v1226 = vcombine.low %v1207, %v1223
        %v1227 = vcombine.high %v1207, %v1223
        %v1228 = vpack.c.bf16 %v1224, %v1224
        %v1229 = vpack.c.bf16 %v1225, %v1225
        %v1230 = vpack.c.bf16 %v1226, %v1226
        %v1231 = vpack.c.bf16 %v1227, %v1227
        %1233 = vrot.lane.b32.xlu0 %v1013, 120
        %v1234 = vpop.permute.xlu0 %1233
        %1236 = vrot.lane.b32.xlu0 %v1013, 112
        %v1237 = vpop.permute.xlu0 %1236
        %1239 = vrot.lane.b32.xlu0 %v1013, 104
        %v1240 = vpop.permute.xlu0 %1239
        %v1242 = vcombine.low %v1013, %v1237
        %v1243 = vcombine.high %v1013, %v1237
        %v1245 = vunpack.c.l.s4 1983009808
        %v1246 = vunpack.c.0.s8 %v1245
        %v1247 = vlaneseq
        %v1248 = vshrl.u32 %v1247, 7
        %v1249 = vsub.s32 %v1246, %v1248
        %v1250 = vrot.slane %v1242, %v1249
        %v1252 = vunpack.c.l.s4 1983009808
        %v1253 = vunpack.c.0.s8 %v1252
        %v1254 = vlaneseq
        %v1255 = vshrl.u32 %v1254, 7
        %v1256 = vsub.s32 %v1253, %v1255
        %v1257 = vrot.slane %v1243, %v1256
        %v1258 = vcombine.low %v1234, %v1240
        %v1259 = vcombine.high %v1234, %v1240
        %v1261 = vunpack.c.l.s4 1983009808
        %v1262 = vunpack.c.0.s8 %v1261
        %v1263 = vlaneseq
        %v1264 = vshrl.u32 %v1263, 7
        %v1265 = vsub.s32 %v1262, %v1264
        %v1266 = vrot.slane %v1258, %v1265
        %v1268 = vunpack.c.l.s4 1983009808
        %v1269 = vunpack.c.0.s8 %v1268
        %v1270 = vlaneseq
        %v1271 = vshrl.u32 %v1270, 7
        %v1272 = vsub.s32 %v1269, %v1271
        %v1273 = vrot.slane %v1259, %v1272
        %v1274 = vcombine.low %v1250, %v1266
        %v1275 = vcombine.high %v1250, %v1266
        %v1277 = vunpack.c.l.s4 1934713408
        %v1278 = vunpack.c.0.s8 %v1277
        %v1279 = vlaneseq
        %v1280 = vshrl.u32 %v1279, 7
        %v1281 = vsub.s32 %v1278, %v1280
        %v1282 = vrot.slane %v1274, %v1281
        %v1284 = vunpack.c.l.s4 1934713408
        %v1285 = vunpack.c.0.s8 %v1284
        %v1286 = vlaneseq
        %v1287 = vshrl.u32 %v1286, 7
        %v1288 = vsub.s32 %v1285, %v1287
        %v1289 = vrot.slane %v1275, %v1288
        %v1290 = vcombine.low %v1257, %v1273
        %v1291 = vcombine.high %v1257, %v1273
        %v1293 = vunpack.c.l.s4 1934713408
        %v1294 = vunpack.c.0.s8 %v1293
        %v1295 = vlaneseq
        %v1296 = vshrl.u32 %v1295, 7
        %v1297 = vsub.s32 %v1294, %v1296
        %v1298 = vrot.slane %v1290, %v1297
        %v1300 = vunpack.c.l.s4 1934713408
        %v1301 = vunpack.c.0.s8 %v1300
        %v1302 = vlaneseq
        %v1303 = vshrl.u32 %v1302, 7
        %v1304 = vsub.s32 %v1301, %v1303
        %v1305 = vrot.slane %v1291, %v1304
        %v1306 = vcombine.high %v1282, 0.0
        %v1307 = vcombine.high %v1289, 0.0
        %v1308 = vcombine.high %v1298, 0.0
        %v1309 = vcombine.high %v1305, 0.0
        %v1310 = vcombine.low %v1282, %v1289
        %v1312 = vunpack.c.l.s4 1983009808
        %v1313 = vunpack.c.0.s8 %v1312
        %v1314 = vlaneseq
        %v1315 = vshrl.u32 %v1314, 7
        %v1316 = vsub.s32 %v1313, %v1315
        %v1317 = vrot.slane %v1310, %v1316
        %v1318 = vcombine.low %v1306, %v1307
        %v1320 = vunpack.c.l.s4 1983009808
        %v1321 = vunpack.c.0.s8 %v1320
        %v1322 = vlaneseq
        %v1323 = vshrl.u32 %v1322, 7
        %v1324 = vsub.s32 %v1321, %v1323
        %v1325 = vrot.slane %v1318, %v1324
        %v1326 = vcombine.low %v1298, %v1305
        %v1328 = vunpack.c.l.s4 1983009808
        %v1329 = vunpack.c.0.s8 %v1328
        %v1330 = vlaneseq
        %v1331 = vshrl.u32 %v1330, 7
        %v1332 = vsub.s32 %v1329, %v1331
        %v1333 = vrot.slane %v1326, %v1332
        %v1334 = vcombine.low %v1308, %v1309
        %v1336 = vunpack.c.l.s4 1983009808
        %v1337 = vunpack.c.0.s8 %v1336
        %v1338 = vlaneseq
        %v1339 = vshrl.u32 %v1338, 7
        %v1340 = vsub.s32 %v1337, %v1339
        %v1341 = vrot.slane %v1334, %v1340
        %v1342 = vcombine.low %v1317, %v1325
        %v1343 = vcombine.high %v1317, %v1325
        %v1345 = vunpack.c.l.s4 1934713408
        %v1346 = vunpack.c.0.s8 %v1345
        %v1347 = vlaneseq
        %v1348 = vshrl.u32 %v1347, 7
        %v1349 = vsub.s32 %v1346, %v1348
        %v1350 = vrot.slane %v1342, %v1349
        %v1352 = vunpack.c.l.s4 1934713408
        %v1353 = vunpack.c.0.s8 %v1352
        %v1354 = vlaneseq
        %v1355 = vshrl.u32 %v1354, 7
        %v1356 = vsub.s32 %v1353, %v1355
        %v1357 = vrot.slane %v1343, %v1356
        %v1358 = vcombine.low %v1333, %v1341
        %v1359 = vcombine.high %v1333, %v1341
        %v1361 = vunpack.c.l.s4 1934713408
        %v1362 = vunpack.c.0.s8 %v1361
        %v1363 = vlaneseq
        %v1364 = vshrl.u32 %v1363, 7
        %v1365 = vsub.s32 %v1362, %v1364
        %v1366 = vrot.slane %v1358, %v1365
        %v1368 = vunpack.c.l.s4 1934713408
        %v1369 = vunpack.c.0.s8 %v1368
        %v1370 = vlaneseq
        %v1371 = vshrl.u32 %v1370, 7
        %v1372 = vsub.s32 %v1369, %v1371
        %v1373 = vrot.slane %v1359, %v1372
        %v1374 = vcombine.low %v1350, %v1366
        %v1375 = vcombine.high %v1350, %v1366
        %v1376 = vcombine.low %v1357, %v1373
        %v1377 = vcombine.high %v1357, %v1373
        %v1378 = vpack.c.bf16 %v1374, %v1374
        %v1379 = vpack.c.bf16 %v1375, %v1375
        %v1380 = vpack.c.bf16 %v1376, %v1376
        %v1381 = vpack.c.bf16 %v1377, %v1377
        %1383 = vrot.lane.b32.xlu0 %v1076, 120
        %v1384 = vpop.permute.xlu0 %1383
        %1386 = vrot.lane.b32.xlu0 %v1076, 112
        %v1387 = vpop.permute.xlu0 %1386
        %1389 = vrot.lane.b32.xlu0 %v1076, 104
        %v1390 = vpop.permute.xlu0 %1389
        %v1392 = vcombine.low %v1076, %v1387
        %v1393 = vcombine.high %v1076, %v1387
        %v1395 = vunpack.c.l.s4 1983009808
        %v1396 = vunpack.c.0.s8 %v1395
        %v1397 = vlaneseq
        %v1398 = vshrl.u32 %v1397, 7
        %v1399 = vsub.s32 %v1396, %v1398
        %v1400 = vrot.slane %v1392, %v1399
        %v1402 = vunpack.c.l.s4 1983009808
        %v1403 = vunpack.c.0.s8 %v1402
        %v1404 = vlaneseq
        %v1405 = vshrl.u32 %v1404, 7
        %v1406 = vsub.s32 %v1403, %v1405
        %v1407 = vrot.slane %v1393, %v1406
        %v1408 = vcombine.low %v1384, %v1390
        %v1409 = vcombine.high %v1384, %v1390
        %v1411 = vunpack.c.l.s4 1983009808
        %v1412 = vunpack.c.0.s8 %v1411
        %v1413 = vlaneseq
        %v1414 = vshrl.u32 %v1413, 7
        %v1415 = vsub.s32 %v1412, %v1414
        %v1416 = vrot.slane %v1408, %v1415
        %v1418 = vunpack.c.l.s4 1983009808
        %v1419 = vunpack.c.0.s8 %v1418
        %v1420 = vlaneseq
        %v1421 = vshrl.u32 %v1420, 7
        %v1422 = vsub.s32 %v1419, %v1421
        %v1423 = vrot.slane %v1409, %v1422
        %v1424 = vcombine.low %v1400, %v1416
        %v1425 = vcombine.high %v1400, %v1416
        %v1427 = vunpack.c.l.s4 1934713408
        %v1428 = vunpack.c.0.s8 %v1427
        %v1429 = vlaneseq
        %v1430 = vshrl.u32 %v1429, 7
        %v1431 = vsub.s32 %v1428, %v1430
        %v1432 = vrot.slane %v1424, %v1431
        %v1434 = vunpack.c.l.s4 1934713408
        %v1435 = vunpack.c.0.s8 %v1434
        %v1436 = vlaneseq
        %v1437 = vshrl.u32 %v1436, 7
        %v1438 = vsub.s32 %v1435, %v1437
        %v1439 = vrot.slane %v1425, %v1438
        %v1440 = vcombine.low %v1407, %v1423
        %v1441 = vcombine.high %v1407, %v1423
        %v1443 = vunpack.c.l.s4 1934713408
        %v1444 = vunpack.c.0.s8 %v1443
        %v1445 = vlaneseq
        %v1446 = vshrl.u32 %v1445, 7
        %v1447 = vsub.s32 %v1444, %v1446
        %v1448 = vrot.slane %v1440, %v1447
        %v1450 = vunpack.c.l.s4 1934713408
        %v1451 = vunpack.c.0.s8 %v1450
        %v1452 = vlaneseq
        %v1453 = vshrl.u32 %v1452, 7
        %v1454 = vsub.s32 %v1451, %v1453
        %v1455 = vrot.slane %v1441, %v1454
        %v1456 = vcombine.high %v1432, 0.0
        %v1457 = vcombine.high %v1439, 0.0
        %v1458 = vcombine.high %v1448, 0.0
        %v1459 = vcombine.high %v1455, 0.0
        %v1460 = vcombine.low %v1432, %v1439
        %v1462 = vunpack.c.l.s4 1983009808
        %v1463 = vunpack.c.0.s8 %v1462
        %v1464 = vlaneseq
        %v1465 = vshrl.u32 %v1464, 7
        %v1466 = vsub.s32 %v1463, %v1465
        %v1467 = vrot.slane %v1460, %v1466
        %v1468 = vcombine.low %v1456, %v1457
        %v1470 = vunpack.c.l.s4 1983009808
        %v1471 = vunpack.c.0.s8 %v1470
        %v1472 = vlaneseq
        %v1473 = vshrl.u32 %v1472, 7
        %v1474 = vsub.s32 %v1471, %v1473
        %v1475 = vrot.slane %v1468, %v1474
        %v1476 = vcombine.low %v1448, %v1455
        %v1478 = vunpack.c.l.s4 1983009808
        %v1479 = vunpack.c.0.s8 %v1478
        %v1480 = vlaneseq
        %v1481 = vshrl.u32 %v1480, 7
        %v1482 = vsub.s32 %v1479, %v1481
        %v1483 = vrot.slane %v1476, %v1482
        %v1484 = vcombine.low %v1458, %v1459
        %v1486 = vunpack.c.l.s4 1983009808
        %v1487 = vunpack.c.0.s8 %v1486
        %v1488 = vlaneseq
        %v1489 = vshrl.u32 %v1488, 7
        %v1490 = vsub.s32 %v1487, %v1489
        %v1491 = vrot.slane %v1484, %v1490
        %v1492 = vcombine.low %v1467, %v1475
        %v1493 = vcombine.high %v1467, %v1475
        %v1495 = vunpack.c.l.s4 1934713408
        %v1496 = vunpack.c.0.s8 %v1495
        %v1497 = vlaneseq
        %v1498 = vshrl.u32 %v1497, 7
        %v1499 = vsub.s32 %v1496, %v1498
        %v1500 = vrot.slane %v1492, %v1499
        %v1502 = vunpack.c.l.s4 1934713408
        %v1503 = vunpack.c.0.s8 %v1502
        %v1504 = vlaneseq
        %v1505 = vshrl.u32 %v1504, 7
        %v1506 = vsub.s32 %v1503, %v1505
        %v1507 = vrot.slane %v1493, %v1506
        %v1508 = vcombine.low %v1483, %v1491
        %v1509 = vcombine.high %v1483, %v1491
        %v1511 = vunpack.c.l.s4 1934713408
        %v1512 = vunpack.c.0.s8 %v1511
        %v1513 = vlaneseq
        %v1514 = vshrl.u32 %v1513, 7
        %v1515 = vsub.s32 %v1512, %v1514
        %v1516 = vrot.slane %v1508, %v1515
        %v1518 = vunpack.c.l.s4 1934713408
        %v1519 = vunpack.c.0.s8 %v1518
        %v1520 = vlaneseq
        %v1521 = vshrl.u32 %v1520, 7
        %v1522 = vsub.s32 %v1519, %v1521
        %v1523 = vrot.slane %v1509, %v1522
        %v1524 = vcombine.low %v1500, %v1516
        %v1525 = vcombine.high %v1500, %v1516
        %v1526 = vcombine.low %v1507, %v1523
        %v1527 = vcombine.high %v1507, %v1523
        %v1528 = vpack.c.bf16 %v1524, %v1524
        %v1529 = vpack.c.bf16 %v1525, %v1525
        %v1530 = vpack.c.bf16 %v1526, %v1526
        %v1531 = vpack.c.bf16 %v1527, %v1527
        %v1533 = vlaneseq
        %v1534 = vshrl.u32 %v1533, 7
        %v1535 = vsub.s32 0, %v1534
        %v1536 = vrot.slane %v887, %v1535
        %vm1538 = vcmask 64512
        %v1540 = vsel %vm1538, %v1228, 0
        %v1543 = vsel %vm1538, %v1378, 0
        %1545 = vmatprep.subr.bf16.mxu0 0
        %1546 = vmatpush1.bf16.xpose.msra.mxu0 %v1543
        %1547 = vmatprep.subr.bf16.mxu0 0
        %1548 = vmatpush1.bf16.xpose.msra.mxu0 0
        %1549 = vmatprep.subr.bf16.mxu0 0
        %1550 = vmatpush1.bf16.xpose.msra.mxu0 0
        %1551 = vmatprep.subr.bf16.mxu0 0
        %1552 = vmatpush1.bf16.xpose.msra.mxu0 0
        %1553 = vmatprep.subr.bf16.mxu0 0
        %1554 = vmatpush1.bf16.xpose.msra.mxu0 0
        %1555 = vmatprep.subr.bf16.mxu0 0
        %1556 = vmatpush1.bf16.xpose.msra.mxu0 0
        %1557 = vmatprep.subr.bf16.mxu0 0
        %1558 = vmatpush1.bf16.xpose.msra.mxu0 0
        %1559 = vmatprep.subr.bf16.mxu0 0
        %1560 = vmatpush1.bf16.xpose.msra.mxu0 0
        %1561 = vmatprep.subr.bf16.mxu0 0
        %1562 = vmatpush1.bf16.xpose.msra.mxu0 0
        %1563 = vmatprep.subr.bf16.mxu0 0
        %1564 = vmatpush1.bf16.xpose.msra.mxu0 0
        %1565 = vmatprep.subr.bf16.mxu0 0
        %1566 = vmatpush1.bf16.xpose.msra.mxu0 0
        %1567 = vmatprep.subr.bf16.mxu0 0
        %1568 = vmatpush1.bf16.xpose.msra.mxu0 0
        %1569 = vmatprep.subr.bf16.mxu0 0
        %1570 = vmatpush1.bf16.xpose.msra.mxu0 0
        %1571 = vmatprep.subr.bf16.mxu0 0
        %1572 = vmatpush1.bf16.xpose.msra.mxu0 0
        %1573 = vmatprep.subr.bf16.mxu0 0
        %1574 = vmatpush1.bf16.xpose.msra.mxu0 0
        %1575 = vmatprep.subr.bf16.mxu0 0
        %1576 = vmatpush1.bf16.xpose.msra.mxu0 0
        %1577 = vmatprep.mubr.bf16.mxu0 0
        %1578 = vmatmul.mubr.bf16.gmra.mrb[0].mxu0 %v1540
        %v1579 = vpop.f32.mrb[0].mxu0
        %v1580 = vadd.f32 %v1536, %v1579
        %v1581 = vpop.f32.mrb[0].mxu0
        %v1582 = vpop.f32.mrb[0].mxu0
        %v1583 = vpop.f32.mrb[0].mxu0
        %1584 = vdwg.mxu0
        %v1586 = vsel %vm1538, %v1229, 0
        %v1589 = vsel %vm1538, %v1379, 0
        %1591 = vmatprep.subr.bf16.mxu0 0
        %1592 = vmatpush1.bf16.xpose.msra.mxu0 %v1589
        %1593 = vmatprep.subr.bf16.mxu0 0
        %1594 = vmatpush1.bf16.xpose.msra.mxu0 0
        %1595 = vmatprep.subr.bf16.mxu0 0
        %1596 = vmatpush1.bf16.xpose.msra.mxu0 0
        %1597 = vmatprep.subr.bf16.mxu0 0
        %1598 = vmatpush1.bf16.xpose.msra.mxu0 0
        %1599 = vmatprep.subr.bf16.mxu0 0
        %1600 = vmatpush1.bf16.xpose.msra.mxu0 0
        %1601 = vmatprep.subr.bf16.mxu0 0
        %1602 = vmatpush1.bf16.xpose.msra.mxu0 0
        %1603 = vmatprep.subr.bf16.mxu0 0
        %1604 = vmatpush1.bf16.xpose.msra.mxu0 0
        %1605 = vmatprep.subr.bf16.mxu0 0
        %1606 = vmatpush1.bf16.xpose.msra.mxu0 0
        %1607 = vmatprep.subr.bf16.mxu0 0
        %1608 = vmatpush1.bf16.xpose.msra.mxu0 0
        %1609 = vmatprep.subr.bf16.mxu0 0
        %1610 = vmatpush1.bf16.xpose.msra.mxu0 0
        %1611 = vmatprep.subr.bf16.mxu0 0
        %1612 = vmatpush1.bf16.xpose.msra.mxu0 0
        %1613 = vmatprep.subr.bf16.mxu0 0
        %1614 = vmatpush1.bf16.xpose.msra.mxu0 0
        %1615 = vmatprep.subr.bf16.mxu0 0
        %1616 = vmatpush1.bf16.xpose.msra.mxu0 0
        %1617 = vmatprep.subr.bf16.mxu0 0
        %1618 = vmatpush1.bf16.xpose.msra.mxu0 0
        %1619 = vmatprep.subr.bf16.mxu0 0
        %1620 = vmatpush1.bf16.xpose.msra.mxu0 0
        %1621 = vmatprep.subr.bf16.mxu0 0
        %1622 = vmatpush1.bf16.xpose.msra.mxu0 0
        %1623 = vmatprep.mubr.bf16.mxu0 0
        %1624 = vmatmul.mubr.bf16.gmra.mrb[0].mxu0 %v1586
        %v1625 = vpop.f32.mrb[0].mxu0
        %v1626 = vadd.f32 %v1536, %v1625
        %v1627 = vpop.f32.mrb[0].mxu0
        %v1628 = vpop.f32.mrb[0].mxu0
        %v1629 = vpop.f32.mrb[0].mxu0
        %1630 = vdwg.mxu0
        %v1632 = vsel %vm1538, %v1230, 0
        %v1635 = vsel %vm1538, %v1380, 0
        %1637 = vmatprep.subr.bf16.mxu0 0
        %1638 = vmatpush1.bf16.xpose.msra.mxu0 %v1635
        %1639 = vmatprep.subr.bf16.mxu0 0
        %1640 = vmatpush1.bf16.xpose.msra.mxu0 0
        %1641 = vmatprep.subr.bf16.mxu0 0
        %1642 = vmatpush1.bf16.xpose.msra.mxu0 0
        %1643 = vmatprep.subr.bf16.mxu0 0
        %1644 = vmatpush1.bf16.xpose.msra.mxu0 0
        %1645 = vmatprep.subr.bf16.mxu0 0
        %1646 = vmatpush1.bf16.xpose.msra.mxu0 0
        %1647 = vmatprep.subr.bf16.mxu0 0
        %1648 = vmatpush1.bf16.xpose.msra.mxu0 0
        %1649 = vmatprep.subr.bf16.mxu0 0
        %1650 = vmatpush1.bf16.xpose.msra.mxu0 0
        %1651 = vmatprep.subr.bf16.mxu0 0
        %1652 = vmatpush1.bf16.xpose.msra.mxu0 0
        %1653 = vmatprep.subr.bf16.mxu0 0
        %1654 = vmatpush1.bf16.xpose.msra.mxu0 0
        %1655 = vmatprep.subr.bf16.mxu0 0
        %1656 = vmatpush1.bf16.xpose.msra.mxu0 0
        %1657 = vmatprep.subr.bf16.mxu0 0
        %1658 = vmatpush1.bf16.xpose.msra.mxu0 0
        %1659 = vmatprep.subr.bf16.mxu0 0
        %1660 = vmatpush1.bf16.xpose.msra.mxu0 0
        %1661 = vmatprep.subr.bf16.mxu0 0
        %1662 = vmatpush1.bf16.xpose.msra.mxu0 0
        %1663 = vmatprep.subr.bf16.mxu0 0
        %1664 = vmatpush1.bf16.xpose.msra.mxu0 0
        %1665 = vmatprep.subr.bf16.mxu0 0
        %1666 = vmatpush1.bf16.xpose.msra.mxu0 0
        %1667 = vmatprep.subr.bf16.mxu0 0
        %1668 = vmatpush1.bf16.xpose.msra.mxu0 0
        %1669 = vmatprep.mubr.bf16.mxu0 0
        %1670 = vmatmul.mubr.bf16.gmra.mrb[0].mxu0 %v1632
        %v1671 = vpop.f32.mrb[0].mxu0
        %v1672 = vadd.f32 %v1536, %v1671
        %v1673 = vpop.f32.mrb[0].mxu0
        %v1674 = vpop.f32.mrb[0].mxu0
        %v1675 = vpop.f32.mrb[0].mxu0
        %1676 = vdwg.mxu0
        %v1678 = vsel %vm1538, %v1231, 0
        %v1681 = vsel %vm1538, %v1381, 0
        %1683 = vmatprep.subr.bf16.mxu0 0
        %1684 = vmatpush1.bf16.xpose.msra.mxu0 %v1681
        %1685 = vmatprep.subr.bf16.mxu0 0
        %1686 = vmatpush1.bf16.xpose.msra.mxu0 0
        %1687 = vmatprep.subr.bf16.mxu0 0
        %1688 = vmatpush1.bf16.xpose.msra.mxu0 0
        %1689 = vmatprep.subr.bf16.mxu0 0
        %1690 = vmatpush1.bf16.xpose.msra.mxu0 0
        %1691 = vmatprep.subr.bf16.mxu0 0
        %1692 = vmatpush1.bf16.xpose.msra.mxu0 0
        %1693 = vmatprep.subr.bf16.mxu0 0
        %1694 = vmatpush1.bf16.xpose.msra.mxu0 0
        %1695 = vmatprep.subr.bf16.mxu0 0
        %1696 = vmatpush1.bf16.xpose.msra.mxu0 0
        %1697 = vmatprep.subr.bf16.mxu0 0
        %1698 = vmatpush1.bf16.xpose.msra.mxu0 0
        %1699 = vmatprep.subr.bf16.mxu0 0
        %1700 = vmatpush1.bf16.xpose.msra.mxu0 0
        %1701 = vmatprep.subr.bf16.mxu0 0
        %1702 = vmatpush1.bf16.xpose.msra.mxu0 0
        %1703 = vmatprep.subr.bf16.mxu0 0
        %1704 = vmatpush1.bf16.xpose.msra.mxu0 0
        %1705 = vmatprep.subr.bf16.mxu0 0
        %1706 = vmatpush1.bf16.xpose.msra.mxu0 0
        %1707 = vmatprep.subr.bf16.mxu0 0
        %1708 = vmatpush1.bf16.xpose.msra.mxu0 0
        %1709 = vmatprep.subr.bf16.mxu0 0
        %1710 = vmatpush1.bf16.xpose.msra.mxu0 0
        %1711 = vmatprep.subr.bf16.mxu0 0
        %1712 = vmatpush1.bf16.xpose.msra.mxu0 0
        %1713 = vmatprep.subr.bf16.mxu0 0
        %1714 = vmatpush1.bf16.xpose.msra.mxu0 0
        %1715 = vmatprep.mubr.bf16.mxu0 0
        %1716 = vmatmul.mubr.bf16.gmra.mrb[0].mxu0 %v1678
        %v1717 = vpop.f32.mrb[0].mxu0
        %v1718 = vadd.f32 %v1536, %v1717
        %v1719 = vpop.f32.mrb[0].mxu0
        %v1720 = vpop.f32.mrb[0].mxu0
        %v1721 = vpop.f32.mrb[0].mxu0
        %1722 = vdwg.mxu0
        %v1723 = vsel %vm1538, %v1580, -inf
        %1724 = vmax.xlane.f32.xlu0 %v1723
        %v1725 = vpop.xlane.xlu0 %1724
        %v1726 = vsel %vm1538, %v1626, -inf
        %1727 = vmax.xlane.f32.xlu0 %v1726
        %v1728 = vpop.xlane.xlu0 %1727
        %v1729 = vsel %vm1538, %v1672, -inf
        %1730 = vmax.xlane.f32.xlu0 %v1729
        %v1731 = vpop.xlane.xlu0 %1730
        %v1732 = vsel %vm1538, %v1718, -inf
        %1733 = vmax.xlane.f32.xlu0 %v1732
        %v1734 = vpop.xlane.xlu0 %1733
        %v1735 = vsub.f32 %v1580, %v1725
        %v1736 = vsub.f32 %v1626, %v1728
        %v1737 = vsub.f32 %v1672, %v1731
        %v1738 = vsub.f32 %v1718, %v1734
        %v1739 = vmul.f32 %v1735, 1.442695
        %v1740 = vpow.pop %v1739
        %v1741 = vmul.f32 %v1736, 1.442695
        %v1742 = vpow.pop %v1741
        %v1743 = vmul.f32 %v1737, 1.442695
        %v1744 = vpow.pop %v1743
        %v1745 = vmul.f32 %v1738, 1.442695
        %v1746 = vpow.pop %v1745
        %v1747 = vsel %vm1538, %v1740, 0.0
        %1748 = vadd.xlane.f32.xlu0 %v1747
        %v1749 = vpop.xlane.xlu0 %1748
        %v1750 = vsel %vm1538, %v1742, 0.0
        %1751 = vadd.xlane.f32.xlu0 %v1750
        %v1752 = vpop.xlane.xlu0 %1751
        %v1753 = vsel %vm1538, %v1744, 0.0
        %1754 = vadd.xlane.f32.xlu0 %v1753
        %v1755 = vpop.xlane.xlu0 %1754
        %v1756 = vsel %vm1538, %v1746, 0.0
        %1757 = vadd.xlane.f32.xlu0 %v1756
        %v1758 = vpop.xlane.xlu0 %1757
        %v1759 = vrcp.pop %v1749
        %v1760 = vrcp.pop %v1752
        %v1761 = vrcp.pop %v1755
        %v1762 = vrcp.pop %v1758
        %v1763 = vmul.f32 %v1740, %v1759
        %v1764 = vmul.f32 %v1742, %v1760
        %v1765 = vmul.f32 %v1744, %v1761
        %v1766 = vmul.f32 %v1746, %v1762
        %v1767 = vpack.c.bf16 %v1763, %v1763
        %v1768 = vpack.c.bf16 %v1764, %v1764
        %v1769 = vpack.c.bf16 %v1765, %v1765
        %v1770 = vpack.c.bf16 %v1766, %v1766
        %v1772 = vsel %vm1538, %v1767, 0
        %vm1774 = vcmask 1043456
        %v1776 = vsel %vm1774, %v1528, 0
        %1778 = vmatprep.subr.bf16.mxu0 0
        %1779 = vmatpush1.bf16.msra.mxu0 %v1776
        %1780 = vmatprep.subr.bf16.mxu0 0
        %1781 = vmatpush1.bf16.msra.mxu0 0
        %1782 = vmatprep.subr.bf16.mxu0 0
        %1783 = vmatpush1.bf16.msra.mxu0 0
        %1784 = vmatprep.subr.bf16.mxu0 0
        %1785 = vmatpush1.bf16.msra.mxu0 0
        %1786 = vmatprep.subr.bf16.mxu0 0
        %1787 = vmatpush1.bf16.msra.mxu0 0
        %1788 = vmatprep.subr.bf16.mxu0 0
        %1789 = vmatpush1.bf16.msra.mxu0 0
        %1790 = vmatprep.subr.bf16.mxu0 0
        %1791 = vmatpush1.bf16.msra.mxu0 0
        %1792 = vmatprep.subr.bf16.mxu0 0
        %1793 = vmatpush1.bf16.msra.mxu0 0
        %1794 = vmatprep.subr.bf16.mxu0 0
        %1795 = vmatpush1.bf16.msra.mxu0 0
        %1796 = vmatprep.subr.bf16.mxu0 0
        %1797 = vmatpush1.bf16.msra.mxu0 0
        %1798 = vmatprep.subr.bf16.mxu0 0
        %1799 = vmatpush1.bf16.msra.mxu0 0
        %1800 = vmatprep.subr.bf16.mxu0 0
        %1801 = vmatpush1.bf16.msra.mxu0 0
        %1802 = vmatprep.subr.bf16.mxu0 0
        %1803 = vmatpush1.bf16.msra.mxu0 0
        %1804 = vmatprep.subr.bf16.mxu0 0
        %1805 = vmatpush1.bf16.msra.mxu0 0
        %1806 = vmatprep.subr.bf16.mxu0 0
        %1807 = vmatpush1.bf16.msra.mxu0 0
        %1808 = vmatprep.subr.bf16.mxu0 0
        %1809 = vmatpush1.bf16.msra.mxu0 0
        %1810 = vmatprep.mubr.bf16.mxu0 0
        %1811 = vmatmul.mubr.bf16.gmra.mrb[0].mxu0 %v1772
        %v1812 = vpop.f32.mrb[0].mxu0
        %v1813 = vadd.f32 0.0, %v1812
        %v1814 = vpop.f32.mrb[0].mxu0
        %v1815 = vpop.f32.mrb[0].mxu0
        %v1816 = vpop.f32.mrb[0].mxu0
        %1817 = vdwg.mxu0
        %v1819 = vsel %vm1538, %v1768, 0
        %v1822 = vsel %vm1774, %v1529, 0
        %1824 = vmatprep.subr.bf16.mxu0 0
        %1825 = vmatpush1.bf16.msra.mxu0 %v1822
        %1826 = vmatprep.subr.bf16.mxu0 0
        %1827 = vmatpush1.bf16.msra.mxu0 0
        %1828 = vmatprep.subr.bf16.mxu0 0
        %1829 = vmatpush1.bf16.msra.mxu0 0
        %1830 = vmatprep.subr.bf16.mxu0 0
        %1831 = vmatpush1.bf16.msra.mxu0 0
        %1832 = vmatprep.subr.bf16.mxu0 0
        %1833 = vmatpush1.bf16.msra.mxu0 0
        %1834 = vmatprep.subr.bf16.mxu0 0
        %1835 = vmatpush1.bf16.msra.mxu0 0
        %1836 = vmatprep.subr.bf16.mxu0 0
        %1837 = vmatpush1.bf16.msra.mxu0 0
        %1838 = vmatprep.subr.bf16.mxu0 0
        %1839 = vmatpush1.bf16.msra.mxu0 0
        %1840 = vmatprep.subr.bf16.mxu0 0
        %1841 = vmatpush1.bf16.msra.mxu0 0
        %1842 = vmatprep.subr.bf16.mxu0 0
        %1843 = vmatpush1.bf16.msra.mxu0 0
        %1844 = vmatprep.subr.bf16.mxu0 0
        %1845 = vmatpush1.bf16.msra.mxu0 0
        %1846 = vmatprep.subr.bf16.mxu0 0
        %1847 = vmatpush1.bf16.msra.mxu0 0
        %1848 = vmatprep.subr.bf16.mxu0 0
        %1849 = vmatpush1.bf16.msra.mxu0 0
        %1850 = vmatprep.subr.bf16.mxu0 0
        %1851 = vmatpush1.bf16.msra.mxu0 0
        %1852 = vmatprep.subr.bf16.mxu0 0
        %1853 = vmatpush1.bf16.msra.mxu0 0
        %1854 = vmatprep.subr.bf16.mxu0 0
        %1855 = vmatpush1.bf16.msra.mxu0 0
        %1856 = vmatprep.mubr.bf16.mxu0 0
        %1857 = vmatmul.mubr.bf16.gmra.mrb[0].mxu0 %v1819
        %v1858 = vpop.f32.mrb[0].mxu0
        %v1859 = vadd.f32 0.0, %v1858
        %v1860 = vpop.f32.mrb[0].mxu0
        %v1861 = vpop.f32.mrb[0].mxu0
        %v1862 = vpop.f32.mrb[0].mxu0
        %1863 = vdwg.mxu0
        %v1865 = vsel %vm1538, %v1769, 0
        %v1868 = vsel %vm1774, %v1530, 0
        %1870 = vmatprep.subr.bf16.mxu0 0
        %1871 = vmatpush1.bf16.msra.mxu0 %v1868
        %1872 = vmatprep.subr.bf16.mxu0 0
        %1873 = vmatpush1.bf16.msra.mxu0 0
        %1874 = vmatprep.subr.bf16.mxu0 0
        %1875 = vmatpush1.bf16.msra.mxu0 0
        %1876 = vmatprep.subr.bf16.mxu0 0
        %1877 = vmatpush1.bf16.msra.mxu0 0
        %1878 = vmatprep.subr.bf16.mxu0 0
        %1879 = vmatpush1.bf16.msra.mxu0 0
        %1880 = vmatprep.subr.bf16.mxu0 0
        %1881 = vmatpush1.bf16.msra.mxu0 0
        %1882 = vmatprep.subr.bf16.mxu0 0
        %1883 = vmatpush1.bf16.msra.mxu0 0
        %1884 = vmatprep.subr.bf16.mxu0 0
        %1885 = vmatpush1.bf16.msra.mxu0 0
        %1886 = vmatprep.subr.bf16.mxu0 0
        %1887 = vmatpush1.bf16.msra.mxu0 0
        %1888 = vmatprep.subr.bf16.mxu0 0
        %1889 = vmatpush1.bf16.msra.mxu0 0
        %1890 = vmatprep.subr.bf16.mxu0 0
        %1891 = vmatpush1.bf16.msra.mxu0 0
        %1892 = vmatprep.subr.bf16.mxu0 0
        %1893 = vmatpush1.bf16.msra.mxu0 0
        %1894 = vmatprep.subr.bf16.mxu0 0
        %1895 = vmatpush1.bf16.msra.mxu0 0
        %1896 = vmatprep.subr.bf16.mxu0 0
        %1897 = vmatpush1.bf16.msra.mxu0 0
        %1898 = vmatprep.subr.bf16.mxu0 0
        %1899 = vmatpush1.bf16.msra.mxu0 0
        %1900 = vmatprep.subr.bf16.mxu0 0
        %1901 = vmatpush1.bf16.msra.mxu0 0
        %1902 = vmatprep.mubr.bf16.mxu0 0
        %1903 = vmatmul.mubr.bf16.gmra.mrb[0].mxu0 %v1865
        %v1904 = vpop.f32.mrb[0].mxu0
        %v1905 = vadd.f32 0.0, %v1904
        %v1906 = vpop.f32.mrb[0].mxu0
        %v1907 = vpop.f32.mrb[0].mxu0
        %v1908 = vpop.f32.mrb[0].mxu0
        %1909 = vdwg.mxu0
        %v1911 = vsel %vm1538, %v1770, 0
        %v1914 = vsel %vm1774, %v1531, 0
        %1916 = vmatprep.subr.bf16.mxu0 0
        %1917 = vmatpush1.bf16.msra.mxu0 %v1914
        %1918 = vmatprep.subr.bf16.mxu0 0
        %1919 = vmatpush1.bf16.msra.mxu0 0
        %1920 = vmatprep.subr.bf16.mxu0 0
        %1921 = vmatpush1.bf16.msra.mxu0 0
        %1922 = vmatprep.subr.bf16.mxu0 0
        %1923 = vmatpush1.bf16.msra.mxu0 0
        %1924 = vmatprep.subr.bf16.mxu0 0
        %1925 = vmatpush1.bf16.msra.mxu0 0
        %1926 = vmatprep.subr.bf16.mxu0 0
        %1927 = vmatpush1.bf16.msra.mxu0 0
        %1928 = vmatprep.subr.bf16.mxu0 0
        %1929 = vmatpush1.bf16.msra.mxu0 0
        %1930 = vmatprep.subr.bf16.mxu0 0
        %1931 = vmatpush1.bf16.msra.mxu0 0
        %1932 = vmatprep.subr.bf16.mxu0 0
        %1933 = vmatpush1.bf16.msra.mxu0 0
        %1934 = vmatprep.subr.bf16.mxu0 0
        %1935 = vmatpush1.bf16.msra.mxu0 0
        %1936 = vmatprep.subr.bf16.mxu0 0
        %1937 = vmatpush1.bf16.msra.mxu0 0
        %1938 = vmatprep.subr.bf16.mxu0 0
        %1939 = vmatpush1.bf16.msra.mxu0 0
        %1940 = vmatprep.subr.bf16.mxu0 0
        %1941 = vmatpush1.bf16.msra.mxu0 0
        %1942 = vmatprep.subr.bf16.mxu0 0
        %1943 = vmatpush1.bf16.msra.mxu0 0
        %1944 = vmatprep.subr.bf16.mxu0 0
        %1945 = vmatpush1.bf16.msra.mxu0 0
        %1946 = vmatprep.subr.bf16.mxu0 0
        %1947 = vmatpush1.bf16.msra.mxu0 0
        %1948 = vmatprep.mubr.bf16.mxu0 0
        %1949 = vmatmul.mubr.bf16.gmra.mrb[0].mxu0 %v1911
        %v1950 = vpop.f32.mrb[0].mxu0
        %v1951 = vadd.f32 0.0, %v1950
        %v1952 = vpop.f32.mrb[0].mxu0
        %v1953 = vpop.f32.mrb[0].mxu0
        %v1954 = vpop.f32.mrb[0].mxu0
        %1955 = vdwg.mxu0
        %v1956 = vcombine.low %v1813, %v1905
        %v1957 = vcombine.high %v1813, %v1905
        %v1959 = vunpack.c.l.s4 1983009808
        %v1960 = vunpack.c.0.s8 %v1959
        %v1961 = vlaneseq
        %v1962 = vshrl.u32 %v1961, 7
        %v1963 = vsub.s32 %v1960, %v1962
        %v1964 = vrot.slane %v1956, %v1963
        %v1966 = vunpack.c.l.s4 1983009808
        %v1967 = vunpack.c.0.s8 %v1966
        %v1968 = vlaneseq
        %v1969 = vshrl.u32 %v1968, 7
        %v1970 = vsub.s32 %v1967, %v1969
        %v1971 = vrot.slane %v1957, %v1970
        %v1972 = vcombine.low %v1859, %v1951
        %v1973 = vcombine.high %v1859, %v1951
        %v1975 = vunpack.c.l.s4 1983009808
        %v1976 = vunpack.c.0.s8 %v1975
        %v1977 = vlaneseq
        %v1978 = vshrl.u32 %v1977, 7
        %v1979 = vsub.s32 %v1976, %v1978
        %v1980 = vrot.slane %v1972, %v1979
        %v1982 = vunpack.c.l.s4 1983009808
        %v1983 = vunpack.c.0.s8 %v1982
        %v1984 = vlaneseq
        %v1985 = vshrl.u32 %v1984, 7
        %v1986 = vsub.s32 %v1983, %v1985
        %v1987 = vrot.slane %v1973, %v1986
        %v1988 = vcombine.low %v1964, %v1980
        %v1989 = vcombine.high %v1964, %v1980
        %v1991 = vunpack.c.l.s4 1934713408
        %v1992 = vunpack.c.0.s8 %v1991
        %v1993 = vlaneseq
        %v1994 = vshrl.u32 %v1993, 7
        %v1995 = vsub.s32 %v1992, %v1994
        %v1996 = vrot.slane %v1988, %v1995
        %v1998 = vunpack.c.l.s4 1934713408
        %v1999 = vunpack.c.0.s8 %v1998
        %v2000 = vlaneseq
        %v2001 = vshrl.u32 %v2000, 7
        %v2002 = vsub.s32 %v1999, %v2001
        %v2003 = vrot.slane %v1989, %v2002
        %v2004 = vcombine.low %v1971, %v1987
        %v2005 = vcombine.high %v1971, %v1987
        %v2007 = vunpack.c.l.s4 1934713408
        %v2008 = vunpack.c.0.s8 %v2007
        %v2009 = vlaneseq
        %v2010 = vshrl.u32 %v2009, 7
        %v2011 = vsub.s32 %v2008, %v2010
        %v2012 = vrot.slane %v2004, %v2011
        %v2014 = vunpack.c.l.s4 1934713408
        %v2015 = vunpack.c.0.s8 %v2014
        %v2016 = vlaneseq
        %v2017 = vshrl.u32 %v2016, 7
        %v2018 = vsub.s32 %v2015, %v2017
        %v2019 = vrot.slane %v2005, %v2018
        %v2020 = vcombine.high %v1996, 0.0
        %v2021 = vcombine.high %v2003, 0.0
        %v2022 = vcombine.high %v2012, 0.0
        %v2023 = vcombine.high %v2019, 0.0
        %v2024 = vcombine.low %v1996, %v2003
        %v2026 = vunpack.c.l.s4 1983009808
        %v2027 = vunpack.c.0.s8 %v2026
        %v2028 = vlaneseq
        %v2029 = vshrl.u32 %v2028, 7
        %v2030 = vsub.s32 %v2027, %v2029
        %v2031 = vrot.slane %v2024, %v2030
        %v2032 = vcombine.low %v2020, %v2021
        %v2034 = vunpack.c.l.s4 1983009808
        %v2035 = vunpack.c.0.s8 %v2034
        %v2036 = vlaneseq
        %v2037 = vshrl.u32 %v2036, 7
        %v2038 = vsub.s32 %v2035, %v2037
        %v2039 = vrot.slane %v2032, %v2038
        %v2040 = vcombine.low %v2012, %v2019
        %v2042 = vunpack.c.l.s4 1983009808
        %v2043 = vunpack.c.0.s8 %v2042
        %v2044 = vlaneseq
        %v2045 = vshrl.u32 %v2044, 7
        %v2046 = vsub.s32 %v2043, %v2045
        %v2047 = vrot.slane %v2040, %v2046
        %v2048 = vcombine.low %v2022, %v2023
        %v2050 = vunpack.c.l.s4 1983009808
        %v2051 = vunpack.c.0.s8 %v2050
        %v2052 = vlaneseq
        %v2053 = vshrl.u32 %v2052, 7
        %v2054 = vsub.s32 %v2051, %v2053
        %v2055 = vrot.slane %v2048, %v2054
        %v2056 = vcombine.low %v2031, %v2039
        %v2057 = vcombine.high %v2031, %v2039
        %v2059 = vunpack.c.l.s4 1934713408
        %v2060 = vunpack.c.0.s8 %v2059
        %v2061 = vlaneseq
        %v2062 = vshrl.u32 %v2061, 7
        %v2063 = vsub.s32 %v2060, %v2062
        %v2064 = vrot.slane %v2056, %v2063
        %v2066 = vunpack.c.l.s4 1934713408
        %v2067 = vunpack.c.0.s8 %v2066
        %v2068 = vlaneseq
        %v2069 = vshrl.u32 %v2068, 7
        %v2070 = vsub.s32 %v2067, %v2069
        %v2071 = vrot.slane %v2057, %v2070
        %v2072 = vcombine.low %v2047, %v2055
        %v2073 = vcombine.high %v2047, %v2055
        %v2075 = vunpack.c.l.s4 1934713408
        %v2076 = vunpack.c.0.s8 %v2075
        %v2077 = vlaneseq
        %v2078 = vshrl.u32 %v2077, 7
        %v2079 = vsub.s32 %v2076, %v2078
        %v2080 = vrot.slane %v2072, %v2079
        %v2082 = vunpack.c.l.s4 1934713408
        %v2083 = vunpack.c.0.s8 %v2082
        %v2084 = vlaneseq
        %v2085 = vshrl.u32 %v2084, 7
        %v2086 = vsub.s32 %v2083, %v2085
        %v2087 = vrot.slane %v2073, %v2086
        %v2088 = vcombine.low %v2064, %v2080
        %v2089 = vcombine.high %v2064, %v2080
        %v2090 = vcombine.low %v2071, %v2087
        %v2091 = vcombine.high %v2071, %v2087
        %2093 = vrot.lane.b32.xlu0 %v2089, 8
        %v2094 = vpop.permute.xlu0 %2093
        %2097 = vrot.lane.b32.xlu0 %v2090, 16
        %v2098 = vpop.permute.xlu0 %2097
        %2101 = vrot.lane.b32.xlu0 %v2091, 24
        %v2102 = vpop.permute.xlu0 %2101
        %v2104 = vsel %vm1538, %v2088, %v2094
        %vm2105 = vcmask 130048
        %v2106 = vsel %vm2105, %v2104, %v2098
        %vm2107 = vcmask 195584
        %v2108 = vsel %vm2107, %v2106, %v2102
        %v2109 = vpack.c.bf16 %v2108, %v2108
        %v2110 = vld [vmem:[%s845] sm:$0xf]
        %v2111 = vld [vmem:[%s845 + $0x4] sm:$0xf]
        %v2112 = vld [vmem:[%s845 + $0x8] sm:$0xf]
        %v2113 = vld [vmem:[%s845 + $0xc] sm:$0xf]
        %v2114 = vld [vmem:[%s848] sm:$0x1]
        %v2116 = vlaneseq
        %v2117 = vshrl.u32 %v2116, 7
        %v2118 = vsub.s32 0, %v2117
        %v2119 = vrot.slane %v2114, %v2118
        %v2125 = vunpack.c.l.b16 %v2110
        %v2126 = vunpack.c.l.b16 %v2111
        %v2127 = vunpack.c.l.b16 %v2112
        %v2128 = vunpack.c.l.b16 %v2113
        %v2129 = vpack.c.b16 %v2126, %v2125
        %v2130 = vpack.c.b16 %v2128, %v2127
        %v2134 = vsel %vm911, %v2109, 0
        %2136 = vmatprep.subr.bf16.mxu0 0
        %2137 = vmatpush1.bf16.msra.mxu0 %v2129
        %2138 = vmatprep.subr.bf16.mxu0 0
        %2139 = vmatpush1.bf16.msra.mxu0 %v2130
        %2140 = vmatprep.subr.bf16.mxu0 0
        %2141 = vmatpush1.bf16.msra.mxu0 0
        %2142 = vmatprep.subr.bf16.mxu0 0
        %2143 = vmatpush1.bf16.msra.mxu0 0
        %2144 = vmatprep.subr.bf16.mxu0 0
        %2145 = vmatpush1.bf16.msra.mxu0 0
        %2146 = vmatprep.subr.bf16.mxu0 0
        %2147 = vmatpush1.bf16.msra.mxu0 0
        %2148 = vmatprep.subr.bf16.mxu0 0
        %2149 = vmatpush1.bf16.msra.mxu0 0
        %2150 = vmatprep.subr.bf16.mxu0 0
        %2151 = vmatpush1.bf16.msra.mxu0 0
        %2152 = vmatprep.subr.bf16.mxu0 0
        %2153 = vmatpush1.bf16.msra.mxu0 0
        %2154 = vmatprep.subr.bf16.mxu0 0
        %2155 = vmatpush1.bf16.msra.mxu0 0
        %2156 = vmatprep.subr.bf16.mxu0 0
        %2157 = vmatpush1.bf16.msra.mxu0 0
        %2158 = vmatprep.subr.bf16.mxu0 0
        %2159 = vmatpush1.bf16.msra.mxu0 0
        %2160 = vmatprep.subr.bf16.mxu0 0
        %2161 = vmatpush1.bf16.msra.mxu0 0
        %2162 = vmatprep.subr.bf16.mxu0 0
        %2163 = vmatpush1.bf16.msra.mxu0 0
        %2164 = vmatprep.subr.bf16.mxu0 0
        %2165 = vmatpush1.bf16.msra.mxu0 0
        %2166 = vmatprep.subr.bf16.mxu0 0
        %2167 = vmatpush1.bf16.msra.mxu0 0
        %2168 = vmatprep.mubr.bf16.mxu0 0
        %2169 = vmatmul.mubr.bf16.gmra.mrb[0].mxu0 %v2134
        %v2170 = vpop.f32.mrb[0].mxu0
        %v2171 = vadd.f32 %v2119, %v2170
        %v2172 = vpop.f32.mrb[0].mxu0
        %v2173 = vpop.f32.mrb[0].mxu0
        %v2174 = vpop.f32.mrb[0].mxu0
        %2175 = vdwg.mxu0
        %v2176 = vadd.f32 %v885, %v2171
        %v2177 = vld [vmem:[%s851] sm:$0x1]
        %v2178 = vld [vmem:[%s854] sm:$0x1]
        %v2179 = vsel %vm911, %v2176, 0.0
        %2180 = vadd.xlane.f32.xlu0 %v2179
        %v2181 = vpop.xlane.xlu0 %2180
        %v2182 = vrcp.pop 32.0
        %v2183 = vmul.f32 %v2181, %v2182
        %v2184 = vsub.f32 %v2176, %v2183
        %v2185 = vmul.f32 %v2184, %v2184
        %v2186 = vsel %vm911, %v2185, 0.0
        %2187 = vadd.xlane.f32.xlu0 %v2186
        %v2188 = vpop.xlane.xlu0 %2187
        %v2189 = vmul.f32 %v2188, %v2182
        %v2190 = vadd.f32 %v2189, 1e-05
        %v2191 = vrsqrt.pop %v2190
        %v2192 = vmul.f32 %v2184, %v2191
        %v2194 = vlaneseq
        %v2195 = vshrl.u32 %v2194, 7
        %v2196 = vsub.s32 0, %v2195
        %v2197 = vrot.slane %v2177, %v2196
        %v2199 = vmul.f32 %v2192, %v2197
        %v2201 = vlaneseq
        %v2202 = vshrl.u32 %v2201, 7
        %v2203 = vsub.s32 0, %v2202
        %v2204 = vrot.slane %v2178, %v2203
        %v2206 = vadd.f32 %v2199, %v2204
        %v2207 = vpack.c.bf16 %v2206, %v2206
        %v2208 = vld [vmem:[%s859] sm:$0xf]
        %v2209 = vld [vmem:[%s859 + $0x4] sm:$0xf]
        %v2210 = vld [vmem:[%s859 + $0x8] sm:$0xf]
        %v2211 = vld [vmem:[%s859 + $0xc] sm:$0xf]
        %v2212 = vld [vmem:[%s862] sm:$0x1]
        %v2214 = vlaneseq
        %v2215 = vshrl.u32 %v2214, 7
        %v2216 = vsub.s32 0, %v2215
        %v2217 = vrot.slane %v2212, %v2216
        %v2223 = vunpack.c.l.b16 %v2208
        %v2224 = vunpack.c.l.b16 %v2209
        %v2225 = vunpack.c.l.b16 %v2210
        %v2226 = vunpack.c.l.b16 %v2211
        %v2227 = vpack.c.b16 %v2224, %v2223
        %v2228 = vpack.c.b16 %v2226, %v2225
        %v2232 = vsel %vm911, %v2207, 0
        %2234 = vmatprep.subr.bf16.mxu0 0
        %2235 = vmatpush1.bf16.msra.mxu0 %v2227
        %2236 = vmatprep.subr.bf16.mxu0 0
        %2237 = vmatpush1.bf16.msra.mxu0 %v2228
        %2238 = vmatprep.subr.bf16.mxu0 0
        %2239 = vmatpush1.bf16.msra.mxu0 0
        %2240 = vmatprep.subr.bf16.mxu0 0
        %2241 = vmatpush1.bf16.msra.mxu0 0
        %2242 = vmatprep.subr.bf16.mxu0 0
        %2243 = vmatpush1.bf16.msra.mxu0 0
        %2244 = vmatprep.subr.bf16.mxu0 0
        %2245 = vmatpush1.bf16.msra.mxu0 0
        %2246 = vmatprep.subr.bf16.mxu0 0
        %2247 = vmatpush1.bf16.msra.mxu0 0
        %2248 = vmatprep.subr.bf16.mxu0 0
        %2249 = vmatpush1.bf16.msra.mxu0 0
        %2250 = vmatprep.subr.bf16.mxu0 0
        %2251 = vmatpush1.bf16.msra.mxu0 0
        %2252 = vmatprep.subr.bf16.mxu0 0
        %2253 = vmatpush1.bf16.msra.mxu0 0
        %2254 = vmatprep.subr.bf16.mxu0 0
        %2255 = vmatpush1.bf16.msra.mxu0 0
        %2256 = vmatprep.subr.bf16.mxu0 0
        %2257 = vmatpush1.bf16.msra.mxu0 0
        %2258 = vmatprep.subr.bf16.mxu0 0
        %2259 = vmatpush1.bf16.msra.mxu0 0
        %2260 = vmatprep.subr.bf16.mxu0 0
        %2261 = vmatpush1.bf16.msra.mxu0 0
        %2262 = vmatprep.subr.bf16.mxu0 0
        %2263 = vmatpush1.bf16.msra.mxu0 0
        %2264 = vmatprep.subr.bf16.mxu0 0
        %2265 = vmatpush1.bf16.msra.mxu0 0
        %2266 = vmatprep.mubr.bf16.mxu0 0
        %2267 = vmatmul.mubr.bf16.gmra.mrb[0].mxu0 %v2232
        %v2268 = vpop.f32.mrb[0].mxu0
        %v2269 = vadd.f32 %v2217, %v2268
        %v2270 = vpop.f32.mrb[0].mxu0
        %v2271 = vpop.f32.mrb[0].mxu0
        %v2272 = vpop.f32.mrb[0].mxu0
        %2273 = vdwg.mxu0
        %v2274 = vmax.f32 %v2269, 0.0
        %v2275 = vpack.c.bf16 %v2274, %v2274
        %v2276 = vld [vmem:[%s867] sm:$0xf]
        %v2277 = vld [vmem:[%s867 + $0x4] sm:$0xf]
        %v2278 = vld [vmem:[%s867 + $0x8] sm:$0xf]
        %v2279 = vld [vmem:[%s867 + $0xc] sm:$0xf]
        %v2280 = vld [vmem:[%s867 + $0x10] sm:$0xf]
        %v2281 = vld [vmem:[%s867 + $0x14] sm:$0xf]
        %v2282 = vld [vmem:[%s867 + $0x18] sm:$0xf]
        %v2283 = vld [vmem:[%s867 + $0x1c] sm:$0xf]
        %v2284 = vld [vmem:[%s867 + $0x20] sm:$0xf]
        %v2285 = vld [vmem:[%s867 + $0x24] sm:$0xf]
        %v2286 = vld [vmem:[%s867 + $0x28] sm:$0xf]
        %v2287 = vld [vmem:[%s867 + $0x2c] sm:$0xf]
        %v2288 = vld [vmem:[%s867 + $0x30] sm:$0xf]
        %v2289 = vld [vmem:[%s867 + $0x34] sm:$0xf]
        %v2290 = vld [vmem:[%s867 + $0x38] sm:$0xf]
        %v2291 = vld [vmem:[%s867 + $0x3c] sm:$0xf]
        %v2292 = vld [vmem:[%s870] sm:$0x1]
        %v2294 = vlaneseq
        %v2295 = vshrl.u32 %v2294, 7
        %v2296 = vsub.s32 0, %v2295
        %v2297 = vrot.slane %v2292, %v2296
        %v2315 = vunpack.c.l.b16 %v2276
        %v2316 = vunpack.c.l.b16 %v2277
        %v2317 = vunpack.c.l.b16 %v2278
        %v2318 = vunpack.c.l.b16 %v2279
        %v2319 = vunpack.c.l.b16 %v2280
        %v2320 = vunpack.c.l.b16 %v2281
        %v2321 = vunpack.c.l.b16 %v2282
        %v2322 = vunpack.c.l.b16 %v2283
        %v2323 = vunpack.c.l.b16 %v2284
        %v2324 = vunpack.c.l.b16 %v2285
        %v2325 = vunpack.c.l.b16 %v2286
        %v2326 = vunpack.c.l.b16 %v2287
        %v2327 = vunpack.c.l.b16 %v2288
        %v2328 = vunpack.c.l.b16 %v2289
        %v2329 = vunpack.c.l.b16 %v2290
        %v2330 = vunpack.c.l.b16 %v2291
        %v2331 = vpack.c.b16 %v2316, %v2315
        %v2332 = vpack.c.b16 %v2318, %v2317
        %v2333 = vpack.c.b16 %v2320, %v2319
        %v2334 = vpack.c.b16 %v2322, %v2321
        %v2335 = vpack.c.b16 %v2324, %v2323
        %v2336 = vpack.c.b16 %v2326, %v2325
        %v2337 = vpack.c.b16 %v2328, %v2327
        %v2338 = vpack.c.b16 %v2330, %v2329
        %2347 = vmatprep.subr.bf16.mxu0 0
        %2348 = vmatpush1.bf16.msra.mxu0 %v2331
        %2349 = vmatprep.subr.bf16.mxu0 0
        %2350 = vmatpush1.bf16.msra.mxu0 %v2332
        %2351 = vmatprep.subr.bf16.mxu0 0
        %2352 = vmatpush1.bf16.msra.mxu0 %v2333
        %2353 = vmatprep.subr.bf16.mxu0 0
        %2354 = vmatpush1.bf16.msra.mxu0 %v2334
        %2355 = vmatprep.subr.bf16.mxu0 0
        %2356 = vmatpush1.bf16.msra.mxu0 %v2335
        %2357 = vmatprep.subr.bf16.mxu0 0
        %2358 = vmatpush1.bf16.msra.mxu0 %v2336
        %2359 = vmatprep.subr.bf16.mxu0 0
        %2360 = vmatpush1.bf16.msra.mxu0 %v2337
        %2361 = vmatprep.subr.bf16.mxu0 0
        %2362 = vmatpush1.bf16.msra.mxu0 %v2338
        %2363 = vmatprep.subr.bf16.mxu0 0
        %2364 = vmatpush1.bf16.msra.mxu0 0
        %2365 = vmatprep.subr.bf16.mxu0 0
        %2366 = vmatpush1.bf16.msra.mxu0 0
        %2367 = vmatprep.subr.bf16.mxu0 0
        %2368 = vmatpush1.bf16.msra.mxu0 0
        %2369 = vmatprep.subr.bf16.mxu0 0
        %2370 = vmatpush1.bf16.msra.mxu0 0
        %2371 = vmatprep.subr.bf16.mxu0 0
        %2372 = vmatpush1.bf16.msra.mxu0 0
        %2373 = vmatprep.subr.bf16.mxu0 0
        %2374 = vmatpush1.bf16.msra.mxu0 0
        %2375 = vmatprep.subr.bf16.mxu0 0
        %2376 = vmatpush1.bf16.msra.mxu0 0
        %2377 = vmatprep.subr.bf16.mxu0 0
        %2378 = vmatpush1.bf16.msra.mxu0 0
        %2379 = vmatprep.mubr.bf16.mxu0 0
        %2380 = vmatmul.mubr.bf16.gmra.mrb[0].mxu0 %v2275
        %v2381 = vpop.f32.mrb[0].mxu0
        %v2382 = vadd.f32 %v2297, %v2381
        %v2383 = vpop.f32.mrb[0].mxu0
        %v2384 = vpop.f32.mrb[0].mxu0
        %v2385 = vpop.f32.mrb[0].mxu0
        %2386 = vdwg.mxu0
        %v2387 = vadd.f32 %v2206, %v2382
        %v2388 = vld [vmem:[%s873] sm:$0x1]
        %v2389 = vld [vmem:[%s876] sm:$0x1]
        %v2390 = vsel %vm911, %v2387, 0.0
        %2391 = vadd.xlane.f32.xlu0 %v2390
        %v2392 = vpop.xlane.xlu0 %2391
        %v2393 = vmul.f32 %v2392, %v2182
        %v2394 = vsub.f32 %v2387, %v2393
        %v2395 = vmul.f32 %v2394, %v2394
        %v2396 = vsel %vm911, %v2395, 0.0
        %2397 = vadd.xlane.f32.xlu0 %v2396
        %v2398 = vpop.xlane.xlu0 %2397
        %v2399 = vmul.f32 %v2398, %v2182
        %v2400 = vadd.f32 %v2399, 1e-05
        %v2401 = vrsqrt.pop %v2400
        %v2402 = vmul.f32 %v2394, %v2401
        %v2404 = vlaneseq
        %v2405 = vshrl.u32 %v2404, 7
        %v2406 = vsub.s32 0, %v2405
        %v2407 = vrot.slane %v2388, %v2406
        %v2409 = vmul.f32 %v2402, %v2407
        %v2411 = vlaneseq
        %v2412 = vshrl.u32 %v2411, 7
        %v2413 = vsub.s32 0, %v2412
        %v2414 = vrot.slane %v2389, %v2413
        %v2416 = vadd.f32 %v2409, %v2414
        %2417 = vst.msk [vmem:[%s813] sm:$0xff] %vm911, %v2416
        %s2418 = sand.u32 %s523, 1
        %s2419 = scalar_lea.sflag [#allocation4], %s2418
        %s2420 = sand.u32 %s523, 1
        %s2421 = smul.addr %s2420, 8
        %s2422 = scalar_lea.vmem [#allocation5], %s2421
        // Predicated region
        $region101: #{tpu_custom_call.1} parent=91 // pred_check
          %p2423 = pneg %p533
        $region102: #{tpu_custom_call.1} parent=91 // pred_check_branch
          %2425 = sbr.rel (%p2423) target = $region104
        $region103: #{tpu_custom_call.1} parent=91 // pred_region
          %s2427 = ssub.s32 128, 128
          %2428 = vsyncadd %s2419, %s2427
          %s2429 = smul.addr %s39, 128
          %s2430 = scalar_lea.hbm %s18, %s2429
          %s2432 = sshll.u32 %s2422, 4
          %s2433 = int_to_ptr.vmem [resolvable:$true] %s2432
          %2435 = dma.vmem_to_hbm [thread:$0]  %s2433, 128, %s2430, %s2419
        $region104: #{tpu_custom_call.1} parent=91 // pred_fallthru
          _
      $region92: #{tpu_custom_call.1} parent=5 // pred_fallthru
        _
      %p2436 = scmp.le.s32.totalorder 2, %s30
      // Predicated region
      $region105: #{tpu_custom_call.1} parent=5 // pred_check
        %p2437 = pneg %p2436
      $region106: #{tpu_custom_call.1} parent=5 // pred_check_branch
        %2439 = sbr.rel (%p2437) target = $region108
      $region107: #{tpu_custom_call.1} parent=5 // pred_region
        %s2440 = ssub.s32 %s30, 2
        // Predicated region
        $region109: #{tpu_custom_call.1} parent=107 // pred_check
          %p2441 = pneg %p539
        $region110: #{tpu_custom_call.1} parent=107 // pred_check_branch
          %2443 = sbr.rel (%p2441) target = $region112
        $region111: #{tpu_custom_call.1} parent=107 // pred_region
          %s2444 = sand.u32 %s524, 1
          %s2445 = scalar_lea.sflag [#allocation4], %s2444
          %s2446 = sand.u32 %s524, 1
          %s2447 = smul.addr %s2446, 8
          %s2448 = scalar_lea.vmem [#allocation5], %s2447
          %2449 = dma.done %s2445, 128
        $region112: #{tpu_custom_call.1} parent=107 // pred_fallthru
          _
      $region108: #{tpu_custom_call.1} parent=5 // pred_fallthru
        _
    $region6: #{tpu_custom_call.1} parent=1 // loop_footer
      %s34 = sadd.s32 1, %s30
    $region7: #{tpu_custom_call.1} parent=1 // loop_footer_branch
      %29 = sbr.rel target = $region3
    $region8: #{tpu_custom_call.1} parent=1 // loop_exit
      _
    %2450 = vsyncpa [#allocation3], 1
    %s2451 = scalar_lea.sflag [#allocation3], 1
    %2452 = vsyncpa %s2451, 1
    %2453 = vsyncpa [#allocation4], 1
    %s2454 = scalar_lea.sflag [#allocation4], 1
    %2455 = vsyncpa %s2454, 1

</llo_original>
